<compile_context>
chip_gen: v7x
topology: tpu7x:2x2x1
jax: 0.10.0
libtpu: 0.0.40
codegen_flags: <defaults>
</compile_context>

<pallas_src>
import functools

import jax
import jax.numpy as jnp
from jax.experimental import pallas as pl
from jax.experimental.pallas import tpu as pltpu


def _round_up(x, m):
    return ((x + m - 1) // m) * m


def _vmem_capacity_bytes():
    """Physical VMEM of the local chip; conservative (v7x-sized) fallback."""
    try:
        return int(pltpu.get_tpu_info().vmem_capacity_bytes)
    except Exception:
        return 64 * 1024 * 1024


def _auto_tile_l(L, Cin_p, Cout_p, K, pad_a, out_bytes, has_downsample):
    """Largest 128-multiple sequence tile that fits a per-generation VMEM budget."""
    budget = int(_vmem_capacity_bytes() * 0.6)
    per_row = (2 * Cin_p * 2                 # double-buffered bf16 input block
               + 2 * Cout_p * out_bytes      # double-buffered output block
               + 2 * Cin_p + 2 * Cout_p      # persistent bf16 halo scratch
               + 3 * Cout_p * 4)             # f32 intermediates (h / out2 / res)
    fixed = (2 * 2 * K * (Cin_p + Cout_p) * Cout_p      # double-buffered bf16 conv weights
             + (2 * 2 * Cin_p * Cout_p if has_downsample else 0)
             + 2 * pad_a * (Cin_p + Cout_p)              # halo rows
             + (1 << 20))                                # misc slack
    tl = (budget - fixed) // per_row
    tl = max(128, (tl // 128) * 128)
    return min(tl, 4096, _round_up(L, 128))


def _temporal_block_kernel(x_ref, w1_ref, b1_ref, w2_ref, b2_ref, *rest,
                           kernel_size, dilation, pad, pad_a, tile_l,
                           has_downsample):
    """Grid = (B, num_L_tiles); one (tile_l, C) time-tile per step.

    x_ref  : (1, tile_l, Cin_p)      bf16 input tile (channels 128-padded)
    w1_ref : (K, Cin_p, Cout_p)      bf16 conv1 weight (one matrix per tap)
    b1_ref : (1, Cout_p)             f32
    w2_ref : (K, Cout_p, Cout_p)     bf16 conv2 weight
    b2_ref : (1, Cout_p)             f32
    [wd_ref: (Cin_p, Cout_p) bf16, bd_ref: (1, Cout_p) f32]  only if downsample
    o_ref  : (1, tile_l, Cout_p)     output tile (bf16 by default)
    xbuf   : VMEM (pad_a+tile_l, Cin_p)  bf16, persistent x halo + current tile
    hbuf   : VMEM (pad_a+tile_l, Cout_p) bf16, persistent h halo + current tile
    """
    if has_downsample:
        wd_ref, bd_ref, o_ref, xbuf, hbuf = rest
    else:
        wd_ref = bd_ref = None
        o_ref, xbuf, hbuf = rest

    t = pl.program_id(1)
    base = pad_a - pad            # first tap offset; rows [0, base) never read

    # --- causal halo: zero on the first L-tile of a batch element, otherwise
    #     carry the previous tile's tail (sublane-aligned pad_a-row block copy).
    @pl.when(t == 0)
    def _():
        xbuf[pl.ds(0, pad_a), :] = jnp.zeros((pad_a, xbuf.shape[1]), xbuf.dtype)
        hbuf[pl.ds(0, pad_a), :] = jnp.zeros((pad_a, hbuf.shape[1]), hbuf.dtype)

    @pl.when(t > 0)
    def _():
        xbuf[pl.ds(0, pad_a), :] = xbuf[pl.ds(tile_l, pad_a), :]
        hbuf[pl.ds(0, pad_a), :] = hbuf[pl.ds(tile_l, pad_a), :]

    # current x tile behind the halo (sublane-aligned store at offset pad_a)
    x_tile = x_ref[0]
    xbuf[pl.ds(pad_a, tile_l), :] = x_tile

    def dilated_conv(buf, w_ref, b_ref):
        # K accumulating MXU dots into one f32 accumulator; no concat slab.
        acc = jnp.dot(buf[pl.ds(base, tile_l), :], w_ref[0],
                      preferred_element_type=jnp.float32)
        for j in range(1, kernel_size):
            acc = acc + jnp.dot(buf[pl.ds(base + j * dilation, tile_l), :],
                                w_ref[j], preferred_element_type=jnp.float32)
        return acc + b_ref[...]

    # conv1 -> bias -> ReLU   (dropout1 = identity in eval)
    h = jnp.maximum(dilated_conv(xbuf, w1_ref, b1_ref), 0.0)
    hbuf[pl.ds(pad_a, tile_l), :] = h.astype(hbuf.dtype)

    # conv2 -> bias -> ReLU   (dropout2 = identity in eval)
    out2 = jnp.maximum(dilated_conv(hbuf, w2_ref, b2_ref), 0.0)

    # residual: 1x1 downsample conv, or a plain identity pass-through
    if has_downsample:
        res = jnp.dot(x_tile, wd_ref[...],
                      preferred_element_type=jnp.float32) + bd_ref[...]
    else:
        res = x_tile.astype(jnp.float32)

    o_ref[0] = jnp.maximum(out2 + res, 0.0).astype(o_ref.dtype)


def temporal_block_pallas(x_ncl, w1, b1, w2, b2, wd=None, bd=None, *,
                          kernel_size, dilation, tile_l=None,
                          out_dtype=jnp.bfloat16):
    """x_ncl: (B, Cin, L) like the PyTorch module.  Returns (B, Cout, L).

    w1: (K, Cin, Cout), w2: (K, Cout, Cout), wd: (Cin, Cout) or None (identity
    residual when n_inputs == n_outputs), biases 1-D.  Weight-norm is assumed
    already folded into w1/w2.  Output dtype is bf16 by default (matmuls run
    in bf16 anyway); pass out_dtype=jnp.float32 if the consumer needs f32.
    """
    B, Cin, L = x_ncl.shape
    K = kernel_size
    Cout = w1.shape[2]
    has_downsample = wd is not None
    if not has_downsample:
        assert Cin == Cout, "identity residual requires n_inputs == n_outputs"

    pad = (K - 1) * dilation
    pad_a = _round_up(max(pad, 1), 16)       # sublane-aligned halo (bf16 -> 16 rows)

    Cin_p = _round_up(Cin, 128)              # lane-dense channel dims
    Cout_p = _round_up(Cout, 128)
    out_bytes = jnp.dtype(out_dtype).itemsize

    if tile_l is None:
        tile_l = _auto_tile_l(L, Cin_p, Cout_p, K, pad_a, out_bytes, has_downsample)
    TL = max(16, min(_round_up(int(tile_l), 16), _round_up(L, 16)))
    L_p = _round_up(L, TL)
    nt = L_p // TL
    if nt > 1:
        assert TL >= pad_a, "sequence tile must cover the causal halo"

    # wrapper-side layout glue: (B, C, L) -> (B, L, C), pad channels to 128
    # multiples, pad L to a tile multiple, cast matmul operands to bf16.
    # TODO(synk): a stack of TemporalBlocks could consume (B, L, Cp) bf16
    #             directly and keep channels-last end-to-end, skipping the
    #             per-block transpose/pad/slice below.
    x_blc = jnp.transpose(x_ncl, (0, 2, 1))
    x_p = jnp.pad(x_blc, ((0, 0), (0, L_p - L), (0, Cin_p - Cin))).astype(jnp.bfloat16)

    w1_p = jnp.pad(w1, ((0, 0), (0, Cin_p - Cin), (0, Cout_p - Cout))).astype(jnp.bfloat16)
    w2_p = jnp.pad(w2, ((0, 0), (0, Cout_p - Cout), (0, Cout_p - Cout))).astype(jnp.bfloat16)
    b1_p = jnp.pad(b1.reshape(1, -1), ((0, 0), (0, Cout_p - Cout))).astype(jnp.float32)
    b2_p = jnp.pad(b2.reshape(1, -1), ((0, 0), (0, Cout_p - Cout))).astype(jnp.float32)

    inputs = [x_p, w1_p, b1_p, w2_p, b2_p]
    # NOTE: weight/bias index maps are constant; pl.Buffered(1) could drop their
    # double-buffering for extra VMEM headroom, left at the default for portability.
    in_specs = [
        pl.BlockSpec((1, TL, Cin_p), lambda b, t: (b, t, 0)),
        pl.BlockSpec((K, Cin_p, Cout_p), lambda b, t: (0, 0, 0)),
        pl.BlockSpec((1, Cout_p), lambda b, t: (0, 0)),
        pl.BlockSpec((K, Cout_p, Cout_p), lambda b, t: (0, 0, 0)),
        pl.BlockSpec((1, Cout_p), lambda b, t: (0, 0)),
    ]
    if has_downsample:
        wd_p = jnp.pad(wd, ((0, Cin_p - Cin), (0, Cout_p - Cout))).astype(jnp.bfloat16)
        bd_p = jnp.pad(bd.reshape(1, -1), ((0, 0), (0, Cout_p - Cout))).astype(jnp.float32)
        inputs += [wd_p, bd_p]
        in_specs += [pl.BlockSpec((Cin_p, Cout_p), lambda b, t: (0, 0)),
                     pl.BlockSpec((1, Cout_p), lambda b, t: (0, 0))]

    kernel = functools.partial(_temporal_block_kernel,
                               kernel_size=K, dilation=dilation,
                               pad=pad, pad_a=pad_a, tile_l=TL,
                               has_downsample=has_downsample)

    vmem_limit = min(int(_vmem_capacity_bytes() * 0.75), 100 * 1024 * 1024)

    out = pl.pallas_call(
        kernel,
        out_shape=jax.ShapeDtypeStruct((B, L_p, Cout_p), out_dtype),
        grid_spec=pltpu.PrefetchScalarGridSpec(
            num_scalar_prefetch=0,
            grid=(B, nt),
            in_specs=in_specs,
            out_specs=pl.BlockSpec((1, TL, Cout_p), lambda b, t: (b, t, 0)),
            scratch_shapes=[
                pltpu.VMEM((pad_a + TL, Cin_p), jnp.bfloat16),
                pltpu.VMEM((pad_a + TL, Cout_p), jnp.bfloat16),
            ],
        ),
        compiler_params=pltpu.CompilerParams(
            # batch axis parallel (megacore); L-tile axis sequential (halo carry)
            dimension_semantics=("parallel", "arbitrary"),
            vmem_limit_bytes=vmem_limit,
        ),
    )(*inputs)

    return jnp.transpose(out[:, :L, :Cout], (0, 2, 1))


def _weight_norm(v, g):
    """PyTorch weight_norm with dim=0: W = g * v / ||v|| (norm over dims 1,2)."""
    norm = jnp.sqrt(jnp.sum(v * v, axis=(1, 2), keepdims=True))
    return g * v / norm


def _reference(x_ncl, w1_t, b1, w2_t, b2, wd, bd, kernel_size, dilation):
    """Pure-JAX reference matching the kernel's bf16-matmul / f32-accumulate math."""
    B, Cin, L = x_ncl.shape
    pad = (kernel_size - 1) * dilation
    x = jnp.transpose(x_ncl, (0, 2, 1)).astype(jnp.bfloat16)

    def causal_conv(inp_bf16, w_t, b):
        inp_p = jnp.pad(inp_bf16, ((0, 0), (pad, 0), (0, 0)))
        acc = jnp.zeros((B, L, w_t.shape[2]), jnp.float32)
        for j in range(kernel_size):
            acc += jnp.einsum(
                'blc,cd->bld',
                inp_p[:, j * dilation:j * dilation + L, :],
                w_t[j].astype(jnp.bfloat16),
                preferred_element_type=jnp.float32)
        return acc + b.reshape(1, 1, -1)

    h = jax.nn.relu(causal_conv(x, w1_t, b1)).astype(jnp.bfloat16)
    o = jax.nn.relu(causal_conv(h, w2_t, b2))
    if wd is None:
        res = x.astype(jnp.float32)
    else:
        res = jnp.einsum('blc,cd->bld', x, wd.astype(jnp.bfloat16),
                         preferred_element_type=jnp.float32) + bd.reshape(1, 1, -1)
    return jnp.transpose(jax.nn.relu(o + res), (0, 2, 1))


if __name__ == "__main__":
    def run_case(key, B, n_inputs, n_outputs, L, kernel_size, dilation, tile_l):
        ks = jax.random.split(key, 9)
        x = jax.random.normal(ks[0], (B, n_inputs, L), jnp.float32)

        v1 = 0.01 * jax.random.normal(ks[1], (n_outputs, n_inputs, kernel_size), jnp.float32)
        g1 = jnp.abs(jax.random.normal(ks[2], (n_outputs, 1, 1), jnp.float32)) + 0.5
        b1 = 0.1 * jax.random.normal(ks[3], (n_outputs,), jnp.float32)
        v2 = 0.01 * jax.random.normal(ks[4], (n_outputs, n_outputs, kernel_size), jnp.float32)
        g2 = jnp.abs(jax.random.normal(ks[5], (n_outputs, 1, 1), jnp.float32)) + 0.5
        b2 = 0.1 * jax.random.normal(ks[6], (n_outputs,), jnp.float32)

        W1 = _weight_norm(v1, g1)                  # (Cout, Cin, K)
        W2 = _weight_norm(v2, g2)                  # (Cout, Cout, K)
        w1_t = jnp.transpose(W1, (2, 1, 0))        # (K, Cin, Cout)
        w2_t = jnp.transpose(W2, (2, 1, 0))        # (K, Cout, Cout)

        if n_inputs != n_outputs:
            Wd = 0.01 * jax.random.normal(ks[7], (n_outputs, n_inputs, 1), jnp.float32)
            bd = 0.1 * jax.random.normal(ks[8], (n_outputs,), jnp.float32)
            wd_t = jnp.transpose(Wd[:, :, 0], (1, 0))   # (Cin, Cout)
        else:
            wd_t = None                                  # identity residual path
            bd = None

        out = temporal_block_pallas(x, w1_t, b1, w2_t, b2, wd_t, bd,
                                    kernel_size=kernel_size, dilation=dilation,
                                    tile_l=tile_l)
        out = jax.block_until_ready(out)
        assert out.shape == (B, n_outputs, L)

        ref = _reference(x, w1_t, b1, w2_t, b2, wd_t, bd, kernel_size, dilation)
        out_f = out.astype(jnp.float32)
        ref_f = ref.astype(jnp.bfloat16).astype(jnp.float32)   # kernel output is bf16
        err = float(jnp.max(jnp.abs(out_f - ref_f)))
        assert jnp.allclose(out_f, ref_f, atol=3e-2, rtol=3e-2), err

    key = jax.random.PRNGKey(0)
    k1, k2 = jax.random.split(key)
    # multi-L-tile case with a real 1x1 downsample: exercises the causal halo
    # carried across tiles and the downsample matmul path.
    run_case(k1, B=2, n_inputs=4, n_outputs=8, L=128,
             kernel_size=3, dilation=2, tile_l=64)
    # single-tile case with identity residual (downsample matmul skipped) and
    # the auto VMEM-budget-derived sequence tile.
    run_case(k2, B=2, n_inputs=8, n_outputs=8, L=64,
             kernel_size=3, dilation=1, tile_l=None)

    print("KERNEL_OK")
</pallas_src>

<mosaic_0001>
module attributes {stable_mosaic.version = 11 : i64} {
  func.func @_temporal_block_kernel(%arg0: i32, %arg1: i32, %arg2: memref<1x64x128xbf16, #tpu.memory_space<vmem>>, %arg3: memref<3x128x128xbf16, #tpu.memory_space<vmem>>, %arg4: memref<1x128xf32, #tpu.memory_space<vmem>>, %arg5: memref<3x128x128xbf16, #tpu.memory_space<vmem>>, %arg6: memref<1x128xf32, #tpu.memory_space<vmem>>, %arg7: memref<128x128xbf16, #tpu.memory_space<vmem>>, %arg8: memref<1x128xf32, #tpu.memory_space<vmem>>, %arg9: memref<1x64x128xbf16, #tpu.memory_space<vmem>>, %arg10: memref<80x128xbf16, #tpu.memory_space<vmem>>, %arg11: memref<80x128xbf16, #tpu.memory_space<vmem>>) attributes {dimension_semantics = [#tpu.dimension_semantics<parallel>, #tpu.dimension_semantics<arbitrary>], iteration_bounds = array<i64: 2, 2>, scalar_prefetch = 0 : i64, scratch_operands = 2 : i64, tpu.core_type = #tpu.core_type<tc>, window_params = [{transform_indices = @transform_0, window_bounds = array<i64: 1, 64, 128>}, {pipeline_mode = #tpu.pipeline_mode<synchronous>, transform_indices = @transform_1, window_bounds = array<i64: 3, 128, 128>}, {pipeline_mode = #tpu.pipeline_mode<synchronous>, transform_indices = @transform_2, window_bounds = array<i64: 1, 128>}, {pipeline_mode = #tpu.pipeline_mode<synchronous>, transform_indices = @transform_3, window_bounds = array<i64: 3, 128, 128>}, {pipeline_mode = #tpu.pipeline_mode<synchronous>, transform_indices = @transform_4, window_bounds = array<i64: 1, 128>}, {pipeline_mode = #tpu.pipeline_mode<synchronous>, transform_indices = @transform_5, window_bounds = array<i64: 128, 128>}, {pipeline_mode = #tpu.pipeline_mode<synchronous>, transform_indices = @transform_6, window_bounds = array<i64: 1, 128>}, {transform_indices = @transform_7, window_bounds = array<i64: 1, 64, 128>}]} {
    %c0_i32 = arith.constant 0 : i32
    %0 = arith.cmpi eq, %arg1, %c0_i32 : i32
    %1 = arith.extui %0 : i1 to i32
    %c0_i32_0 = arith.constant 0 : i32
    %2 = arith.cmpi ne, %1, %c0_i32_0 : i32
    scf.if %2 {
      %cst_54 = arith.constant 0.000000e+00 : bf16
      %61 = vector.broadcast %cst_54 : bf16 to vector<16x128xbf16>
      %c0_55 = arith.constant 0 : index
      %c0_56 = arith.constant 0 : index
      %62 = vector.load %arg10[%c0_55, %c0_56] : memref<80x128xbf16, #tpu.memory_space<vmem>>, vector<16x128xbf16>
      tpu.vector_store %arg10[%c0_55, %c0_56], %61 {strides = array<i32>} : memref<80x128xbf16, #tpu.memory_space<vmem>>, vector<16x128xbf16>,
      %cst_57 = arith.constant 0.000000e+00 : bf16
      %63 = vector.broadcast %cst_57 : bf16 to vector<16x128xbf16>
      %c0_58 = arith.constant 0 : index
      %c0_59 = arith.constant 0 : index
      %64 = vector.load %arg11[%c0_58, %c0_59] : memref<80x128xbf16, #tpu.memory_space<vmem>>, vector<16x128xbf16>
      tpu.vector_store %arg11[%c0_58, %c0_59], %63 {strides = array<i32>} : memref<80x128xbf16, #tpu.memory_space<vmem>>, vector<16x128xbf16>,
    } else {
    }
    %c0_i32_1 = arith.constant 0 : i32
    %3 = arith.cmpi sgt, %arg1, %c0_i32_1 : i32
    %4 = arith.extui %3 : i1 to i32
    %c0_i32_2 = arith.constant 0 : i32
    %5 = arith.cmpi ne, %4, %c0_i32_2 : i32
    scf.if %5 {
      %c64 = arith.constant 64 : index
      %c0_54 = arith.constant 0 : index
      %61 = vector.load %arg10[%c64, %c0_54] : memref<80x128xbf16, #tpu.memory_space<vmem>>, vector<16x128xbf16>
      %c0_55 = arith.constant 0 : index
      %c0_56 = arith.constant 0 : index
      %62 = vector.load %arg10[%c0_55, %c0_56] : memref<80x128xbf16, #tpu.memory_space<vmem>>, vector<16x128xbf16>
      tpu.vector_store %arg10[%c0_55, %c0_56], %61 {strides = array<i32>} : memref<80x128xbf16, #tpu.memory_space<vmem>>, vector<16x128xbf16>,
      %c64_57 = arith.constant 64 : index
      %c0_58 = arith.constant 0 : index
      %63 = vector.load %arg11[%c64_57, %c0_58] : memref<80x128xbf16, #tpu.memory_space<vmem>>, vector<16x128xbf16>
      %c0_59 = arith.constant 0 : index
      %c0_60 = arith.constant 0 : index
      %64 = vector.load %arg11[%c0_59, %c0_60] : memref<80x128xbf16, #tpu.memory_space<vmem>>, vector<16x128xbf16>
      tpu.vector_store %arg11[%c0_59, %c0_60], %63 {strides = array<i32>} : memref<80x128xbf16, #tpu.memory_space<vmem>>, vector<16x128xbf16>,
    } else {
    }
    %c0 = arith.constant 0 : index
    %c0_3 = arith.constant 0 : index
    %c0_4 = arith.constant 0 : index
    %6 = vector.load %arg2[%c0, %c0_3, %c0_4] : memref<1x64x128xbf16, #tpu.memory_space<vmem>>, vector<1x64x128xbf16>
    %7 = vector.shape_cast %6 : vector<1x64x128xbf16> to vector<64x128xbf16>
    %c16 = arith.constant 16 : index
    %c0_5 = arith.constant 0 : index
    %8 = vector.load %arg10[%c16, %c0_5] : memref<80x128xbf16, #tpu.memory_space<vmem>>, vector<64x128xbf16>
    tpu.vector_store %arg10[%c16, %c0_5], %7 {strides = array<i32>} : memref<80x128xbf16, #tpu.memory_space<vmem>>, vector<64x128xbf16>,
    %c12 = arith.constant 12 : index
    %c0_6 = arith.constant 0 : index
    %9 = vector.load %arg10[%c12, %c0_6] : memref<80x128xbf16, #tpu.memory_space<vmem>>, vector<64x128xbf16>
    %c0_7 = arith.constant 0 : index
    %c0_8 = arith.constant 0 : index
    %c0_9 = arith.constant 0 : index
    %10 = vector.load %arg3[%c0_7, %c0_8, %c0_9] : memref<3x128x128xbf16, #tpu.memory_space<vmem>>, vector<1x128x128xbf16>
    %11 = vector.shape_cast %10 : vector<1x128x128xbf16> to vector<128x128xbf16>
    %cst = arith.constant dense<0.000000e+00> : vector<64x128xf32>
    %12 = tpu.matmul %9, %11, %cst {dimension_numbers = #tpu.dot_dimension_numbers<[1], [0], [0], [1], [0, 0, 1, 1], [], []>} : vector<64x128xbf16>, vector<128x128xbf16>, vector<64x128xf32> -> vector<64x128xf32>
    %c14 = arith.constant 14 : index
    %c0_10 = arith.constant 0 : index
    %13 = vector.load %arg10[%c14, %c0_10] : memref<80x128xbf16, #tpu.memory_space<vmem>>, vector<64x128xbf16>
    %c1 = arith.constant 1 : index
    %c0_11 = arith.constant 0 : index
    %c0_12 = arith.constant 0 : index
    %14 = vector.load %arg3[%c1, %c0_11, %c0_12] : memref<3x128x128xbf16, #tpu.memory_space<vmem>>, vector<1x128x128xbf16>
    %15 = vector.shape_cast %14 : vector<1x128x128xbf16> to vector<128x128xbf16>
    %cst_13 = arith.constant dense<0.000000e+00> : vector<64x128xf32>
    %16 = tpu.matmul %13, %15, %cst_13 {dimension_numbers = #tpu.dot_dimension_numbers<[1], [0], [0], [1], [0, 0, 1, 1], [], []>} : vector<64x128xbf16>, vector<128x128xbf16>, vector<64x128xf32> -> vector<64x128xf32>
    %17 = arith.addf %12, %16 : vector<64x128xf32>
    %c16_14 = arith.constant 16 : index
    %c0_15 = arith.constant 0 : index
    %18 = vector.load %arg10[%c16_14, %c0_15] : memref<80x128xbf16, #tpu.memory_space<vmem>>, vector<64x128xbf16>
    %c2 = arith.constant 2 : index
    %c0_16 = arith.constant 0 : index
    %c0_17 = arith.constant 0 : index
    %19 = vector.load %arg3[%c2, %c0_16, %c0_17] : memref<3x128x128xbf16, #tpu.memory_space<vmem>>, vector<1x128x128xbf16>
    %20 = vector.shape_cast %19 : vector<1x128x128xbf16> to vector<128x128xbf16>
    %cst_18 = arith.constant dense<0.000000e+00> : vector<64x128xf32>
    %21 = tpu.matmul %18, %20, %cst_18 {dimension_numbers = #tpu.dot_dimension_numbers<[1], [0], [0], [1], [0, 0, 1, 1], [], []>} : vector<64x128xbf16>, vector<128x128xbf16>, vector<64x128xf32> -> vector<64x128xf32>
    %22 = arith.addf %17, %21 : vector<64x128xf32>
    %c0_19 = arith.constant 0 : index
    %c0_20 = arith.constant 0 : index
    %23 = vector.load %arg4[%c0_19, %c0_20] : memref<1x128xf32, #tpu.memory_space<vmem>>, vector<1x128xf32>
    %24 = vector.broadcast %23 : vector<1x128xf32> to vector<64x128xf32>
    %25 = arith.addf %22, %24 : vector<64x128xf32>
    %cst_21 = arith.constant 0.000000e+00 : f32
    %26 = vector.broadcast %cst_21 : f32 to vector<64x128xf32>
    %27 = arith.maximumf %25, %26 : vector<64x128xf32>
    %28 = arith.truncf %27 : vector<64x128xf32> to vector<64x128xbf16>
    %c16_22 = arith.constant 16 : index
    %c0_23 = arith.constant 0 : index
    %29 = vector.load %arg11[%c16_22, %c0_23] : memref<80x128xbf16, #tpu.memory_space<vmem>>, vector<64x128xbf16>
    tpu.vector_store %arg11[%c16_22, %c0_23], %28 {strides = array<i32>} : memref<80x128xbf16, #tpu.memory_space<vmem>>, vector<64x128xbf16>,
    %c12_24 = arith.constant 12 : index
    %c0_25 = arith.constant 0 : index
    %30 = vector.load %arg11[%c12_24, %c0_25] : memref<80x128xbf16, #tpu.memory_space<vmem>>, vector<64x128xbf16>
    %c0_26 = arith.constant 0 : index
    %c0_27 = arith.constant 0 : index
    %c0_28 = arith.constant 0 : index
    %31 = vector.load %arg5[%c0_26, %c0_27, %c0_28] : memref<3x128x128xbf16, #tpu.memory_space<vmem>>, vector<1x128x128xbf16>
    %32 = vector.shape_cast %31 : vector<1x128x128xbf16> to vector<128x128xbf16>
    %cst_29 = arith.constant dense<0.000000e+00> : vector<64x128xf32>
    %33 = tpu.matmul %30, %32, %cst_29 {dimension_numbers = #tpu.dot_dimension_numbers<[1], [0], [0], [1], [0, 0, 1, 1], [], []>} : vector<64x128xbf16>, vector<128x128xbf16>, vector<64x128xf32> -> vector<64x128xf32>
    %c14_30 = arith.constant 14 : index
    %c0_31 = arith.constant 0 : index
    %34 = vector.load %arg11[%c14_30, %c0_31] : memref<80x128xbf16, #tpu.memory_space<vmem>>, vector<64x128xbf16>
    %c1_32 = arith.constant 1 : index
    %c0_33 = arith.constant 0 : index
    %c0_34 = arith.constant 0 : index
    %35 = vector.load %arg5[%c1_32, %c0_33, %c0_34] : memref<3x128x128xbf16, #tpu.memory_space<vmem>>, vector<1x128x128xbf16>
    %36 = vector.shape_cast %35 : vector<1x128x128xbf16> to vector<128x128xbf16>
    %cst_35 = arith.constant dense<0.000000e+00> : vector<64x128xf32>
    %37 = tpu.matmul %34, %36, %cst_35 {dimension_numbers = #tpu.dot_dimension_numbers<[1], [0], [0], [1], [0, 0, 1, 1], [], []>} : vector<64x128xbf16>, vector<128x128xbf16>, vector<64x128xf32> -> vector<64x128xf32>
    %38 = arith.addf %33, %37 : vector<64x128xf32>
    %c16_36 = arith.constant 16 : index
    %c0_37 = arith.constant 0 : index
    %39 = vector.load %arg11[%c16_36, %c0_37] : memref<80x128xbf16, #tpu.memory_space<vmem>>, vector<64x128xbf16>
    %c2_38 = arith.constant 2 : index
    %c0_39 = arith.constant 0 : index
    %c0_40 = arith.constant 0 : index
    %40 = vector.load %arg5[%c2_38, %c0_39, %c0_40] : memref<3x128x128xbf16, #tpu.memory_space<vmem>>, vector<1x128x128xbf16>
    %41 = vector.shape_cast %40 : vector<1x128x128xbf16> to vector<128x128xbf16>
    %cst_41 = arith.constant dense<0.000000e+00> : vector<64x128xf32>
    %42 = tpu.matmul %39, %41, %cst_41 {dimension_numbers = #tpu.dot_dimension_numbers<[1], [0], [0], [1], [0, 0, 1, 1], [], []>} : vector<64x128xbf16>, vector<128x128xbf16>, vector<64x128xf32> -> vector<64x128xf32>
    %43 = arith.addf %38, %42 : vector<64x128xf32>
    %c0_42 = arith.constant 0 : index
    %c0_43 = arith.constant 0 : index
    %44 = vector.load %arg6[%c0_42, %c0_43] : memref<1x128xf32, #tpu.memory_space<vmem>>, vector<1x128xf32>
    %45 = vector.broadcast %44 : vector<1x128xf32> to vector<64x128xf32>
    %46 = arith.addf %43, %45 : vector<64x128xf32>
    %cst_44 = arith.constant 0.000000e+00 : f32
    %47 = vector.broadcast %cst_44 : f32 to vector<64x128xf32>
    %48 = arith.maximumf %46, %47 : vector<64x128xf32>
    %c0_45 = arith.constant 0 : index
    %c0_46 = arith.constant 0 : index
    %49 = vector.load %arg7[%c0_45, %c0_46] : memref<128x128xbf16, #tpu.memory_space<vmem>>, vector<128x128xbf16>
    %cst_47 = arith.constant dense<0.000000e+00> : vector<64x128xf32>
    %50 = tpu.matmul %7, %49, %cst_47 {dimension_numbers = #tpu.dot_dimension_numbers<[1], [0], [0], [1], [0, 0, 1, 1], [], []>} : vector<64x128xbf16>, vector<128x128xbf16>, vector<64x128xf32> -> vector<64x128xf32>
    %c0_48 = arith.constant 0 : index
    %c0_49 = arith.constant 0 : index
    %51 = vector.load %arg8[%c0_48, %c0_49] : memref<1x128xf32, #tpu.memory_space<vmem>>, vector<1x128xf32>
    %52 = vector.broadcast %51 : vector<1x128xf32> to vector<64x128xf32>
    %53 = arith.addf %50, %52 : vector<64x128xf32>
    %54 = arith.addf %48, %53 : vector<64x128xf32>
    %cst_50 = arith.constant 0.000000e+00 : f32
    %55 = vector.broadcast %cst_50 : f32 to vector<64x128xf32>
    %56 = arith.maximumf %54, %55 : vector<64x128xf32>
    %57 = arith.truncf %56 : vector<64x128xf32> to vector<64x128xbf16>
    %c0_51 = arith.constant 0 : index
    %c0_52 = arith.constant 0 : index
    %c0_53 = arith.constant 0 : index
    %58 = vector.load %arg9[%c0_51, %c0_52, %c0_53] : memref<1x64x128xbf16, #tpu.memory_space<vmem>>, vector<1x64x128xbf16>
    %59 = vector.shape_cast %58 : vector<1x64x128xbf16> to vector<64x128xbf16>
    %60 = vector.shape_cast %57 : vector<64x128xbf16> to vector<1x64x128xbf16>
    tpu.vector_store %arg9[%c0_51, %c0_52, %c0_53], %60 {strides = array<i32>} : memref<1x64x128xbf16, #tpu.memory_space<vmem>>, vector<1x64x128xbf16>,
    return
  }
  func.func @transform_0(%arg0: i32, %arg1: i32) -> (i32, i32, i32) {
    %c0_i32 = arith.constant 0 : i32
    %c0_i32_0 = arith.constant 0 : i32
    return %arg0, %arg1, %c0_i32 : i32, i32, i32
  }
  func.func @transform_1(%arg0: i32, %arg1: i32) -> (i32, i32, i32) {
    %c0_i32 = arith.constant 0 : i32
    %c0_i32_0 = arith.constant 0 : i32
    %c0_i32_1 = arith.constant 0 : i32
    %c0_i32_2 = arith.constant 0 : i32
    return %c0_i32, %c0_i32_0, %c0_i32_1 : i32, i32, i32
  }
  func.func @transform_2(%arg0: i32, %arg1: i32) -> (i32, i32) {
    %c0_i32 = arith.constant 0 : i32
    %c0_i32_0 = arith.constant 0 : i32
    %c0_i32_1 = arith.constant 0 : i32
    return %c0_i32, %c0_i32_0 : i32, i32
  }
  func.func @transform_3(%arg0: i32, %arg1: i32) -> (i32, i32, i32) {
    %c0_i32 = arith.constant 0 : i32
    %c0_i32_0 = arith.constant 0 : i32
    %c0_i32_1 = arith.constant 0 : i32
    %c0_i32_2 = arith.constant 0 : i32
    return %c0_i32, %c0_i32_0, %c0_i32_1 : i32, i32, i32
  }
  func.func @transform_4(%arg0: i32, %arg1: i32) -> (i32, i32) {
    %c0_i32 = arith.constant 0 : i32
    %c0_i32_0 = arith.constant 0 : i32
    %c0_i32_1 = arith.constant 0 : i32
    return %c0_i32, %c0_i32_0 : i32, i32
  }
  func.func @transform_5(%arg0: i32, %arg1: i32) -> (i32, i32) {
    %c0_i32 = arith.constant 0 : i32
    %c0_i32_0 = arith.constant 0 : i32
    %c0_i32_1 = arith.constant 0 : i32
    return %c0_i32, %c0_i32_0 : i32, i32
  }
  func.func @transform_6(%arg0: i32, %arg1: i32) -> (i32, i32) {
    %c0_i32 = arith.constant 0 : i32
    %c0_i32_0 = arith.constant 0 : i32
    %c0_i32_1 = arith.constant 0 : i32
    return %c0_i32, %c0_i32_0 : i32, i32
  }
  func.func @transform_7(%arg0: i32, %arg1: i32) -> (i32, i32, i32) {
    %c0_i32 = arith.constant 0 : i32
    %c0_i32_0 = arith.constant 0 : i32
    return %arg0, %arg1, %c0_i32 : i32, i32, i32
  }
}

</mosaic_0001>

<llo_original>
// kernel: tpu_custom_call.1
$region0: #{tpu_custom_call.1}
  #allocation0 [shape = 'u32[]', space=smem, size = 0x4, offset = 0x4, fixed_abs, tag = 'smem constant byte address 0x4 - core index']
  #allocation1 [shape = 'u32[144,128]{1,0:T(1,128)}', space=vmem, size = 0x12000, scoped, tag = 'internal scratch']
  #allocation2 [shape = 'bf16[80,128]{1,0:T(16,128)(2,1)}', space=vmem, size = 0x5000, scoped, tag = 'scratch operand']
  #allocation3 [shape = 'bf16[80,128]{1,0:T(16,128)(2,1)}', space=vmem, size = 0x5000, scoped, tag = 'scratch operand']
  %s0 = inlined_call_operand.hbm [shape: bf16[2,128,128], index: 0, kind: input, shape index: {}]
  %s1 = inlined_call_operand.hbm [shape: bf16[3,128,128], index: 1, kind: input, shape index: {}]
  %s2 = inlined_call_operand.vmem [shape: f32[1,128], index: 2, kind: input, shape index: {}]
  %s3 = inlined_call_operand.hbm [shape: bf16[3,128,128], index: 3, kind: input, shape index: {}]
  %s4 = inlined_call_operand.vmem [shape: f32[1,128], index: 4, kind: input, shape index: {}]
  %s5 = inlined_call_operand.hbm [shape: bf16[128,128], index: 5, kind: input, shape index: {}]
  %s6 = inlined_call_operand.vmem [shape: f32[1,128], index: 6, kind: input, shape index: {}]
  %s7 = inlined_call_operand.hbm [shape: bf16[2,128,128], index: 7, kind: output, shape index: {}]
  %s8 = sld [smem:[#allocation0]]
  $region85: #{tpu_custom_call.1} parent=0
    _
  %s10 = ssub.s32 1, %s8
  %s11 = scalar_select 0, %s10, %s8
  $region1: #{tpu_custom_call.1} parent=0
    #allocation4 [shape = 'u8[32768]{0}', space=vmem, size = 0x8000, scoped, tag = 'input window, operand 0']
    #allocation5 [shape = 's32[2]{0}', space=sflag, size = 0x8, scoped, tag = 'scoped memory for tpu_custom_call.1']
    #allocation6 [shape = 's32[2]{0}', space=sflag, size = 0x8, scoped, tag = 'scoped memory for tpu_custom_call.1']
    #allocation7 [shape = 'u8[98304]{0}', space=vmem, size = 0x18000, scoped, tag = 'input window, operand 1, single buffered']
    #allocation8 [shape = 's32[1]{0}', space=sflag, size = 0x4, scoped, tag = 'scoped memory for tpu_custom_call.1']
    #allocation9 [shape = 'u8[98304]{0}', space=vmem, size = 0x18000, scoped, tag = 'input window, operand 3, single buffered']
    #allocation10 [shape = 'u8[32768]{0}', space=vmem, size = 0x8000, scoped, tag = 'input window, operand 5, single buffered']
    #allocation11 [shape = 's32[1]{0}', space=sflag, size = 0x4, scoped, tag = 'scoped memory for tpu_custom_call.1']
    #allocation12 [shape = 'u8[32768]{0}', space=vmem, size = 0x8000, scoped, tag = 'output window, operand 0']
    %12 = vsyncpa [#allocation5], 0
    %s13 = scalar_lea.sflag [#allocation5], 1
    %14 = vsyncpa %s13, 0
    %15 = vsyncpa [#allocation8], 0
    %16 = vsyncpa [#allocation11], 0
    %17 = vsyncpa [#allocation6], 0
    %s18 = scalar_lea.sflag [#allocation6], 1
    %19 = vsyncpa %s18, 0
    loop: start=0, step=1, limit=6
    $region2: #{tpu_custom_call.1} parent=1 // loop_pre_header
      _
    $region3: #{tpu_custom_call.1} parent=1 // loop_header
      %s21 = sphi 0, %s25
      %p22 = scmp.ge.s32.totalorder %s21, 6
      %s28 = sphi 0, %s40
      %s29 = sphi 0, %s36
      %s30 = sphi 0, %s28
      %s31 = sphi 0, %s29
      %s32 = sphi 0, %s30
      %s33 = sphi 0, %s31
      %s45 = sphi 0, %s47
      %s48 = sphi 0, %s45
      %s49 = sphi 0, %s48
      %s65 = sphi 0, %s49
      %s69 = sphi 0, %s69
      %s71 = sphi 0, %s69
      %s72 = sphi 0, %s71
      %s86 = sphi 0, %s72
      %s90 = sphi 0, %s90
      %s92 = sphi 0, %s90
      %s93 = sphi 0, %s92
      %s107 = sphi 0, %s93
      %s111 = sphi 0, %s111
      %s113 = sphi 0, %s111
      %s114 = sphi 0, %s113
      %s128 = sphi 0, %s114
      %s132 = sphi 0, %s132
      %s134 = sphi 0, %s132
      %s135 = sphi 0, %s134
      %s149 = sphi 0, %s135
      %s153 = sphi 0, %s153
      %s155 = sphi 0, %s153
      %s156 = sphi 0, %s155
      %s170 = sphi 0, %s156
      %s174 = sphi 0, %s174
      %s176 = sphi 0, %s174
      %s177 = sphi 0, %s176
      %s191 = sphi 0, %s177
      %s199 = sphi 0, %s201
      %s202 = sphi 0, %s199
      %s203 = sphi 0, %s202
      %s219 = sphi 0, %s203
    $region4: #{tpu_custom_call.1} parent=1 // loop_header_branch
      %24 = sbr.rel (%p22) target = $region8
    $region5: #{tpu_custom_call.1} parent=1 // loop_body
      %s26 = ssub.s32 %s21, 1
      %s27 = ssub.s32 %s21, 2
      %s34 = sadd.s32 1, %s29
      %p35 = scmp.ge.s32.totalorder %s34, 2
      %s36 = scalar_select %p35, 0, %s34
      %s37 = sadd.s32 1, %s28
      %s38 = scalar_select %p35, %s37, %s28
      %p39 = scmp.ge.s32.totalorder %s38, 2
      %s40 = scalar_select %p39, 0, %s38
      %s41 = ssub.s32 %s28, %s40
      %s42 = ssub.s32 %s29, %s36
      %s43 = sor.u32 %s41, %s42
      %p44 = scmp.eq.s32.totalorder %s43, 0
      %s46 = sadd.s32 %s45, 1
      %s47 = scalar_select %p44, %s45, %s46
      %p50 = pneg %p44
      %p51 = scmp.eq.s32.totalorder %s21, 3
      %p52 = por %p50, %p51
      %p53 = scmp.ne.s32.totalorder %s45, %s48
      %p54 = scmp.eq.s32.totalorder %s21, 0
      %p55 = por %p53, %p54
      %p56 = scmp.ne.s32.totalorder %s45, %s48
      %p57 = scmp.eq.s32.totalorder %s26, 3
      %p58 = por %p56, %p57
      %p59 = scmp.ne.s32.totalorder %s48, %s49
      %p60 = scmp.eq.s32.totalorder %s26, 0
      %p61 = por %p59, %p60
      %p62 = scmp.ne.s32.totalorder %s48, %s49
      %p63 = scmp.eq.s32.totalorder %s27, 3
      %p64 = por %p62, %p63
      %p66 = scmp.ne.s32.totalorder %s49, %s65
      %p67 = scmp.eq.s32.totalorder %s27, 0
      %p68 = por %p66, %p67
      %s70 = sadd.s32 %s69, 1
      %p73 = scmp.eq.s32.totalorder %s21, 3
      %p74 = scmp.ne.s32.totalorder %s69, %s71
      %p75 = scmp.eq.s32.totalorder %s21, 0
      %p76 = por %p74, %p75
      %p77 = scmp.ne.s32.totalorder %s69, %s71
      %p78 = scmp.eq.s32.totalorder %s26, 3
      %p79 = por %p77, %p78
      %p80 = scmp.ne.s32.totalorder %s71, %s72
      %p81 = scmp.eq.s32.totalorder %s26, 0
      %p82 = por %p80, %p81
      %p83 = scmp.ne.s32.totalorder %s71, %s72
      %p84 = scmp.eq.s32.totalorder %s27, 3
      %p85 = por %p83, %p84
      %p87 = scmp.ne.s32.totalorder %s72, %s86
      %p88 = scmp.eq.s32.totalorder %s27, 0
      %p89 = por %p87, %p88
      %s91 = sadd.s32 %s90, 1
      %p94 = scmp.eq.s32.totalorder %s21, 3
      %p95 = scmp.ne.s32.totalorder %s90, %s92
      %p96 = scmp.eq.s32.totalorder %s21, 0
      %p97 = por %p95, %p96
      %p98 = scmp.ne.s32.totalorder %s90, %s92
      %p99 = scmp.eq.s32.totalorder %s26, 3
      %p100 = por %p98, %p99
      %p101 = scmp.ne.s32.totalorder %s92, %s93
      %p102 = scmp.eq.s32.totalorder %s26, 0
      %p103 = por %p101, %p102
      %p104 = scmp.ne.s32.totalorder %s92, %s93
      %p105 = scmp.eq.s32.totalorder %s27, 3
      %p106 = por %p104, %p105
      %p108 = scmp.ne.s32.totalorder %s93, %s107
      %p109 = scmp.eq.s32.totalorder %s27, 0
      %p110 = por %p108, %p109
      %s112 = sadd.s32 %s111, 1
      %p115 = scmp.eq.s32.totalorder %s21, 3
      %p116 = scmp.ne.s32.totalorder %s111, %s113
      %p117 = scmp.eq.s32.totalorder %s21, 0
      %p118 = por %p116, %p117
      %p119 = scmp.ne.s32.totalorder %s111, %s113
      %p120 = scmp.eq.s32.totalorder %s26, 3
      %p121 = por %p119, %p120
      %p122 = scmp.ne.s32.totalorder %s113, %s114
      %p123 = scmp.eq.s32.totalorder %s26, 0
      %p124 = por %p122, %p123
      %p125 = scmp.ne.s32.totalorder %s113, %s114
      %p126 = scmp.eq.s32.totalorder %s27, 3
      %p127 = por %p125, %p126
      %p129 = scmp.ne.s32.totalorder %s114, %s128
      %p130 = scmp.eq.s32.totalorder %s27, 0
      %p131 = por %p129, %p130
      %s133 = sadd.s32 %s132, 1
      %p136 = scmp.eq.s32.totalorder %s21, 3
      %p137 = scmp.ne.s32.totalorder %s132, %s134
      %p138 = scmp.eq.s32.totalorder %s21, 0
      %p139 = por %p137, %p138
      %p140 = scmp.ne.s32.totalorder %s132, %s134
      %p141 = scmp.eq.s32.totalorder %s26, 3
      %p142 = por %p140, %p141
      %p143 = scmp.ne.s32.totalorder %s134, %s135
      %p144 = scmp.eq.s32.totalorder %s26, 0
      %p145 = por %p143, %p144
      %p146 = scmp.ne.s32.totalorder %s134, %s135
      %p147 = scmp.eq.s32.totalorder %s27, 3
      %p148 = por %p146, %p147
      %p150 = scmp.ne.s32.totalorder %s135, %s149
      %p151 = scmp.eq.s32.totalorder %s27, 0
      %p152 = por %p150, %p151
      %s154 = sadd.s32 %s153, 1
      %p157 = scmp.eq.s32.totalorder %s21, 3
      %p158 = scmp.ne.s32.totalorder %s153, %s155
      %p159 = scmp.eq.s32.totalorder %s21, 0
      %p160 = por %p158, %p159
      %p161 = scmp.ne.s32.totalorder %s153, %s155
      %p162 = scmp.eq.s32.totalorder %s26, 3
      %p163 = por %p161, %p162
      %p164 = scmp.ne.s32.totalorder %s155, %s156
      %p165 = scmp.eq.s32.totalorder %s26, 0
      %p166 = por %p164, %p165
      %p167 = scmp.ne.s32.totalorder %s155, %s156
      %p168 = scmp.eq.s32.totalorder %s27, 3
      %p169 = por %p167, %p168
      %p171 = scmp.ne.s32.totalorder %s156, %s170
      %p172 = scmp.eq.s32.totalorder %s27, 0
      %p173 = por %p171, %p172
      %s175 = sadd.s32 %s174, 1
      %p178 = scmp.eq.s32.totalorder %s21, 3
      %p179 = scmp.ne.s32.totalorder %s174, %s176
      %p180 = scmp.eq.s32.totalorder %s21, 0
      %p181 = por %p179, %p180
      %p182 = scmp.ne.s32.totalorder %s174, %s176
      %p183 = scmp.eq.s32.totalorder %s26, 3
      %p184 = por %p182, %p183
      %p185 = scmp.ne.s32.totalorder %s176, %s177
      %p186 = scmp.eq.s32.totalorder %s26, 0
      %p187 = por %p185, %p186
      %p188 = scmp.ne.s32.totalorder %s176, %s177
      %p189 = scmp.eq.s32.totalorder %s27, 3
      %p190 = por %p188, %p189
      %p192 = scmp.ne.s32.totalorder %s177, %s191
      %p193 = scmp.eq.s32.totalorder %s27, 0
      %p194 = por %p192, %p193
      %s195 = ssub.s32 %s28, %s40
      %s196 = ssub.s32 %s29, %s36
      %s197 = sor.u32 %s195, %s196
      %p198 = scmp.eq.s32.totalorder %s197, 0
      %s200 = sadd.s32 %s199, 1
      %s201 = scalar_select %p198, %s199, %s200
      %p204 = pneg %p198
      %p205 = scmp.eq.s32.totalorder %s21, 3
      %p206 = por %p204, %p205
      %p207 = scmp.ne.s32.totalorder %s199, %s202
      %p208 = scmp.eq.s32.totalorder %s21, 0
      %p209 = por %p207, %p208
      %p210 = scmp.ne.s32.totalorder %s199, %s202
      %p211 = scmp.eq.s32.totalorder %s26, 3
      %p212 = por %p210, %p211
      %p213 = scmp.ne.s32.totalorder %s202, %s203
      %p214 = scmp.eq.s32.totalorder %s26, 0
      %p215 = por %p213, %p214
      %p216 = scmp.ne.s32.totalorder %s202, %s203
      %p217 = scmp.eq.s32.totalorder %s27, 3
      %p218 = por %p216, %p217
      %p220 = scmp.ne.s32.totalorder %s203, %s219
      %p221 = scmp.eq.s32.totalorder %s27, 0
      %p222 = por %p220, %p221
      %p223 = scmp.le.s32.totalorder 1, %s21
      %p224 = scmp.lt.s32.totalorder %s21, 5
      %p225 = pnand %p223, %p224
      %p226 = pneg %p225
      // Predicated region
      $region9: #{tpu_custom_call.1} parent=5 // pred_check
        _
      $region10: #{tpu_custom_call.1} parent=5 // pred_check_branch
        %228 = sbr.rel (%p225) target = $region12
      $region11: #{tpu_custom_call.1} parent=5 // pred_region
        %s229 = ssub.s32 %s21, 1
        // Predicated region
        $region13: #{tpu_custom_call.1} parent=11 // pred_check
          %p230 = pneg %p82
        $region14: #{tpu_custom_call.1} parent=11 // pred_check_branch
          %232 = sbr.rel (%p230) target = $region16
        $region15: #{tpu_custom_call.1} parent=11 // pred_region
          %s234 = ssub.s32 3072, 3072
          %235 = vsyncadd [#allocation8], %s234
          %s236 = sshll.u32 [#allocation7], 4
          %s237 = int_to_ptr.vmem [resolvable:$true] %s236
          %242 = dma.hbm_to_vmem [thread:$0]  %s1, 3072, %s237, [#allocation8], 64, 64, 4
        $region16: #{tpu_custom_call.1} parent=11 // pred_fallthru
          _
        // Predicated region
        $region17: #{tpu_custom_call.1} parent=11 // pred_check
          %p243 = pneg %p103
        $region18: #{tpu_custom_call.1} parent=11 // pred_check_branch
          %245 = sbr.rel (%p243) target = $region20
        $region19: #{tpu_custom_call.1} parent=11 // pred_region
          _
        $region20: #{tpu_custom_call.1} parent=11 // pred_fallthru
          _
        // Predicated region
        $region21: #{tpu_custom_call.1} parent=11 // pred_check
          %p246 = pneg %p124
        $region22: #{tpu_custom_call.1} parent=11 // pred_check_branch
          %248 = sbr.rel (%p246) target = $region24
        $region23: #{tpu_custom_call.1} parent=11 // pred_region
          %s250 = ssub.s32 3072, 3072
          %251 = vsyncadd [#allocation8], %s250
          %s252 = sshll.u32 [#allocation9], 4
          %s253 = int_to_ptr.vmem [resolvable:$true] %s252
          %258 = dma.hbm_to_vmem [thread:$0]  %s3, 3072, %s253, [#allocation8], 64, 64, 4
        $region24: #{tpu_custom_call.1} parent=11 // pred_fallthru
          _
        // Predicated region
        $region25: #{tpu_custom_call.1} parent=11 // pred_check
          %p259 = pneg %p145
        $region26: #{tpu_custom_call.1} parent=11 // pred_check_branch
          %261 = sbr.rel (%p259) target = $region28
        $region27: #{tpu_custom_call.1} parent=11 // pred_region
          _
        $region28: #{tpu_custom_call.1} parent=11 // pred_fallthru
          _
        // Predicated region
        $region29: #{tpu_custom_call.1} parent=11 // pred_check
          %p262 = pneg %p166
        $region30: #{tpu_custom_call.1} parent=11 // pred_check_branch
          %264 = sbr.rel (%p262) target = $region32
        $region31: #{tpu_custom_call.1} parent=11 // pred_region
          %s266 = ssub.s32 1024, 1024
          %267 = vsyncadd [#allocation11], %s266
          %s268 = sshll.u32 [#allocation10], 4
          %s269 = int_to_ptr.vmem [resolvable:$true] %s268
          %274 = dma.hbm_to_vmem [thread:$0]  %s5, 1024, %s269, [#allocation11], 64, 64, 4
        $region32: #{tpu_custom_call.1} parent=11 // pred_fallthru
          _
        // Predicated region
        $region33: #{tpu_custom_call.1} parent=11 // pred_check
          %p275 = pneg %p187
        $region34: #{tpu_custom_call.1} parent=11 // pred_check_branch
          %277 = sbr.rel (%p275) target = $region36
        $region35: #{tpu_custom_call.1} parent=11 // pred_region
          _
        $region36: #{tpu_custom_call.1} parent=11 // pred_fallthru
          _
      $region12: #{tpu_custom_call.1} parent=5 // pred_fallthru
        _
      %p278 = scmp.lt.s32.totalorder %s21, 4
      // Predicated region
      $region37: #{tpu_custom_call.1} parent=5 // pred_check
        %p279 = pneg %p278
      $region38: #{tpu_custom_call.1} parent=5 // pred_check_branch
        %281 = sbr.rel (%p279) target = $region40
      $region39: #{tpu_custom_call.1} parent=5 // pred_region
        // Predicated region
        $region41: #{tpu_custom_call.1} parent=39 // pred_check
          %p282 = pneg %p55
        $region42: #{tpu_custom_call.1} parent=39 // pred_check_branch
          %284 = sbr.rel (%p282) target = $region44
        $region43: #{tpu_custom_call.1} parent=39 // pred_region
          %s285 = sand.u32 %s45, 1
          %s286 = scalar_lea.sflag [#allocation5], %s285
          %s287 = sand.u32 %s45, 1
          %s288 = smul.addr %s287, 32
          %s289 = scalar_lea.vmem [#allocation4], %s288
          %s290 = smul.u32 8, %s29
          %s292 = ssub.s32 512, 512
          %293 = vsyncadd %s286, %s292
          %s294 = smul.addr %s28, 16
          %s295 = sadd.s32 %s290, %s294
          %s296 = smul.addr %s295, 64
          %s297 = scalar_lea.hbm %s0, %s296
          %s298 = sshll.u32 %s289, 4
          %s299 = int_to_ptr.vmem [resolvable:$true] %s298
          %304 = dma.hbm_to_vmem [thread:$0]  %s297, 512, %s299, %s286, 64, 64, 4
        $region44: #{tpu_custom_call.1} parent=39 // pred_fallthru
          _
      $region40: #{tpu_custom_call.1} parent=5 // pred_fallthru
        _
      %p305 = scmp.le.s32.totalorder 1, %s21
      %p306 = scmp.lt.s32.totalorder %s21, 5
      %p307 = pnand %p305, %p306
      %p308 = pneg %p307
      // Predicated region
      $region45: #{tpu_custom_call.1} parent=5 // pred_check
        _
      $region46: #{tpu_custom_call.1} parent=5 // pred_check_branch
        %310 = sbr.rel (%p307) target = $region48
      $region47: #{tpu_custom_call.1} parent=5 // pred_region
        %s311 = ssub.s32 %s21, 1
        %s312 = sand.u32 %s48, 1
        %s313 = scalar_lea.sflag [#allocation5], %s312
        %s314 = sand.u32 %s48, 1
        %s315 = smul.addr %s314, 32
        %s316 = scalar_lea.vmem [#allocation4], %s315
        // Predicated region
        $region49: #{tpu_custom_call.1} parent=47 // pred_check
          %p317 = pneg %p61
        $region50: #{tpu_custom_call.1} parent=47 // pred_check_branch
          %319 = sbr.rel (%p317) target = $region52
        $region51: #{tpu_custom_call.1} parent=47 // pred_region
          %320 = dma.done %s313, 512
        $region52: #{tpu_custom_call.1} parent=47 // pred_fallthru
          _
        // Predicated region
        $region53: #{tpu_custom_call.1} parent=47 // pred_check
          %p321 = pneg %p82
        $region54: #{tpu_custom_call.1} parent=47 // pred_check_branch
          %323 = sbr.rel (%p321) target = $region56
        $region55: #{tpu_custom_call.1} parent=47 // pred_region
          %324 = dma.done [#allocation8], 3072
        $region56: #{tpu_custom_call.1} parent=47 // pred_fallthru
          _
        // Predicated region
        $region57: #{tpu_custom_call.1} parent=47 // pred_check
          %p325 = pneg %p124
        $region58: #{tpu_custom_call.1} parent=47 // pred_check_branch
          %327 = sbr.rel (%p325) target = $region60
        $region59: #{tpu_custom_call.1} parent=47 // pred_region
          %328 = dma.done [#allocation8], 3072
        $region60: #{tpu_custom_call.1} parent=47 // pred_fallthru
          _
        // Predicated region
        $region61: #{tpu_custom_call.1} parent=47 // pred_check
          %p329 = pneg %p166
        $region62: #{tpu_custom_call.1} parent=47 // pred_check_branch
          %331 = sbr.rel (%p329) target = $region64
        $region63: #{tpu_custom_call.1} parent=47 // pred_region
          %332 = dma.done [#allocation11], 1024
        $region64: #{tpu_custom_call.1} parent=47 // pred_fallthru
          _
        %s333 = sand.u32 %s48, 1
        %s334 = scalar_lea.sflag [#allocation5], %s333
        %s335 = sand.u32 %s48, 1
        %s336 = smul.addr %s335, 32
        %s337 = scalar_lea.vmem [#allocation4], %s336
        %p338 = pneg %p61
        %p339 = pneg %p58
        %p340 = pneg %p82
        %p341 = pneg %p79
        %p342 = pneg %p103
        %p343 = pneg %p100
        %p344 = pneg %p124
        %p345 = pneg %p121
        %p346 = pneg %p145
        %p347 = pneg %p142
        %p348 = pneg %p166
        %p349 = pneg %p163
        %p350 = pneg %p187
        %p351 = pneg %p184
        %p352 = pneg %p215
        %p353 = pneg %p212
        %s354 = sand.u32 %s202, 1
        %s355 = scalar_lea.sflag [#allocation6], %s354
        %s356 = sand.u32 %s202, 1
        %s357 = smul.addr %s356, 32
        %s358 = scalar_lea.vmem [#allocation12], %s357
        %s359 = smul.u32 8, %s31
        %s360 = smul.u32 8, %s31
        %p362 = scmp.eq.s32.totalorder %s31, 0
        // Predicated region
        $region65: #{tpu_custom_call.1} parent=47 // pred_check
          %p363 = pneg %p362
        $region66: #{tpu_custom_call.1} parent=47 // pred_check_branch
          %365 = sbr.rel (%p363) target = $region68
        $region67: #{tpu_custom_call.1} parent=47 // pred_region
          %366 = vst [vmem:[#allocation2] sm:$0xff] 0
          %367 = vst [vmem:[#allocation3] sm:$0xff] 0
        $region68: #{tpu_custom_call.1} parent=47 // pred_fallthru
          _
        %p368 = scmp.gt.s32.totalorder %s31, 0
        // Predicated region
        $region69: #{tpu_custom_call.1} parent=47 // pred_check
          %p369 = pneg %p368
        $region70: #{tpu_custom_call.1} parent=47 // pred_check_branch
          %371 = sbr.rel (%p369) target = $region72
        $region71: #{tpu_custom_call.1} parent=47 // pred_region
          %v372 = vld [vmem:[#allocation2 + $0x20] sm:$0xff]
          %373 = vst [vmem:[#allocation2] sm:$0xff] %v372
          %v374 = vld [vmem:[#allocation3 + $0x20] sm:$0xff]
          %375 = vst [vmem:[#allocation3] sm:$0xff] %v374
        $region72: #{tpu_custom_call.1} parent=47 // pred_fallthru
          _
        %v376 = vld [vmem:[%s316] sm:$0xf]
        %v377 = vld [vmem:[%s316 + $0x4] sm:$0xf]
        %v378 = vld [vmem:[%s316 + $0x8] sm:$0xf]
        %v379 = vld [vmem:[%s316 + $0xc] sm:$0xf]
        %v380 = vld [vmem:[%s316 + $0x10] sm:$0xf]
        %v381 = vld [vmem:[%s316 + $0x14] sm:$0xf]
        %v382 = vld [vmem:[%s316 + $0x18] sm:$0xf]
        %v383 = vld [vmem:[%s316 + $0x1c] sm:$0xf]
        %v392 = vunpack.c.l.b16 %v376
        %v393 = vunpack.c.l.b16 %v377
        %v394 = vunpack.c.l.b16 %v378
        %v395 = vunpack.c.l.b16 %v379
        %v396 = vunpack.c.l.b16 %v380
        %v397 = vunpack.c.l.b16 %v381
        %v398 = vunpack.c.l.b16 %v382
        %v399 = vunpack.c.l.b16 %v383
        %v400 = vpack.c.b16 %v393, %v392
        %v401 = vpack.c.b16 %v395, %v394
        %v402 = vpack.c.b16 %v397, %v396
        %v403 = vpack.c.b16 %v399, %v398
        %408 = vst [vmem:[#allocation2 + $0x8] sm:$0xff] %v400
        %409 = vst [vmem:[#allocation2 + $0x10] sm:$0xff] %v401
        %410 = vst [vmem:[#allocation2 + $0x18] sm:$0xff] %v402
        %411 = vst [vmem:[#allocation2 + $0x20] sm:$0xff] %v403
        %v412 = vld [vmem:[#allocation2] sm:$0xc0]
        %v413 = vld [vmem:[#allocation2 + $0x8] sm:$0xff]
        %v414 = vld [vmem:[#allocation2 + $0x10] sm:$0xff]
        %v415 = vld [vmem:[#allocation2 + $0x18] sm:$0xff]
        %v416 = vld [vmem:[#allocation2 + $0x20] sm:$0x3f]
        %v417 = vld [vmem:[#allocation7] sm:$0xf]
        %v418 = vld [vmem:[#allocation7 + $0x4] sm:$0xf]
        %v419 = vld [vmem:[#allocation7 + $0x8] sm:$0xf]
        %v420 = vld [vmem:[#allocation7 + $0xc] sm:$0xf]
        %v421 = vld [vmem:[#allocation7 + $0x10] sm:$0xf]
        %v422 = vld [vmem:[#allocation7 + $0x14] sm:$0xf]
        %v423 = vld [vmem:[#allocation7 + $0x18] sm:$0xf]
        %v424 = vld [vmem:[#allocation7 + $0x1c] sm:$0xf]
        %v425 = vld [vmem:[#allocation7 + $0x20] sm:$0xf]
        %v426 = vld [vmem:[#allocation7 + $0x24] sm:$0xf]
        %v427 = vld [vmem:[#allocation7 + $0x28] sm:$0xf]
        %v428 = vld [vmem:[#allocation7 + $0x2c] sm:$0xf]
        %v429 = vld [vmem:[#allocation7 + $0x30] sm:$0xf]
        %v430 = vld [vmem:[#allocation7 + $0x34] sm:$0xf]
        %v431 = vld [vmem:[#allocation7 + $0x38] sm:$0xf]
        %v432 = vld [vmem:[#allocation7 + $0x3c] sm:$0xf]
        %v433 = vld [vmem:[#allocation2] sm:$0x80]
        %v434 = vld [vmem:[#allocation2 + $0x20] sm:$0x7f]
        %s435 = scalar_lea.vmem [#allocation7], 64
        %v436 = vld [vmem:[%s435] sm:$0xf]
        %v437 = vld [vmem:[%s435 + $0x4] sm:$0xf]
        %v438 = vld [vmem:[%s435 + $0x8] sm:$0xf]
        %v439 = vld [vmem:[%s435 + $0xc] sm:$0xf]
        %v440 = vld [vmem:[%s435 + $0x10] sm:$0xf]
        %v441 = vld [vmem:[%s435 + $0x14] sm:$0xf]
        %v442 = vld [vmem:[%s435 + $0x18] sm:$0xf]
        %v443 = vld [vmem:[%s435 + $0x1c] sm:$0xf]
        %v444 = vld [vmem:[%s435 + $0x20] sm:$0xf]
        %v445 = vld [vmem:[%s435 + $0x24] sm:$0xf]
        %v446 = vld [vmem:[%s435 + $0x28] sm:$0xf]
        %v447 = vld [vmem:[%s435 + $0x2c] sm:$0xf]
        %v448 = vld [vmem:[%s435 + $0x30] sm:$0xf]
        %v449 = vld [vmem:[%s435 + $0x34] sm:$0xf]
        %v450 = vld [vmem:[%s435 + $0x38] sm:$0xf]
        %v451 = vld [vmem:[%s435 + $0x3c] sm:$0xf]
        %vm457 = vcmask 1040384
        %v458 = vrot.slane %v433, 7
        %v459 = vrot.slane %v413, 7
        %v460 = vsel %vm457, %v458, %v459
        %v461 = vrot.slane %v414, 7
        %v462 = vsel %vm457, %v459, %v461
        %v463 = vrot.slane %v415, 7
        %v464 = vsel %vm457, %v461, %v463
        %v465 = vrot.slane %v434, 7
        %v466 = vsel %vm457, %v463, %v465
        %v487 = vunpack.c.l.b16 %v436
        %v488 = vunpack.c.l.b16 %v437
        %v489 = vunpack.c.l.b16 %v438
        %v490 = vunpack.c.l.b16 %v439
        %v491 = vunpack.c.l.b16 %v440
        %v492 = vunpack.c.l.b16 %v441
        %v493 = vunpack.c.l.b16 %v442
        %v494 = vunpack.c.l.b16 %v443
        %v495 = vunpack.c.l.b16 %v444
        %v496 = vunpack.c.l.b16 %v445
        %v497 = vunpack.c.l.b16 %v446
        %v498 = vunpack.c.l.b16 %v447
        %v499 = vunpack.c.l.b16 %v448
        %v500 = vunpack.c.l.b16 %v449
        %v501 = vunpack.c.l.b16 %v450
        %v502 = vunpack.c.l.b16 %v451
        %v503 = vpack.c.b16 %v488, %v487
        %v504 = vpack.c.b16 %v490, %v489
        %v505 = vpack.c.b16 %v492, %v491
        %v506 = vpack.c.b16 %v494, %v493
        %v507 = vpack.c.b16 %v496, %v495
        %v508 = vpack.c.b16 %v498, %v497
        %v509 = vpack.c.b16 %v500, %v499
        %v510 = vpack.c.b16 %v502, %v501
        %519 = vmatprep.subr.bf16.mxu0 0
        %520 = vmatpush1.bf16.msra.mxu0 %v503
        %521 = vmatprep.subr.bf16.mxu0 0
        %522 = vmatpush1.bf16.msra.mxu0 %v504
        %523 = vmatprep.subr.bf16.mxu0 0
        %524 = vmatpush1.bf16.msra.mxu0 %v505
        %525 = vmatprep.subr.bf16.mxu0 0
        %526 = vmatpush1.bf16.msra.mxu0 %v506
        %527 = vmatprep.subr.bf16.mxu0 0
        %528 = vmatpush1.bf16.msra.mxu0 %v507
        %529 = vmatprep.subr.bf16.mxu0 0
        %530 = vmatpush1.bf16.msra.mxu0 %v508
        %531 = vmatprep.subr.bf16.mxu0 0
        %532 = vmatpush1.bf16.msra.mxu0 %v509
        %533 = vmatprep.subr.bf16.mxu0 0
        %534 = vmatpush1.bf16.msra.mxu0 %v510
        %535 = vmatprep.subr.bf16.mxu0 0
        %536 = vmatpush1.bf16.msra.mxu0 0
        %537 = vmatprep.subr.bf16.mxu0 0
        %538 = vmatpush1.bf16.msra.mxu0 0
        %539 = vmatprep.subr.bf16.mxu0 0
        %540 = vmatpush1.bf16.msra.mxu0 0
        %541 = vmatprep.subr.bf16.mxu0 0
        %542 = vmatpush1.bf16.msra.mxu0 0
        %543 = vmatprep.subr.bf16.mxu0 0
        %544 = vmatpush1.bf16.msra.mxu0 0
        %545 = vmatprep.subr.bf16.mxu0 0
        %546 = vmatpush1.bf16.msra.mxu0 0
        %547 = vmatprep.subr.bf16.mxu0 0
        %548 = vmatpush1.bf16.msra.mxu0 0
        %549 = vmatprep.subr.bf16.mxu0 0
        %550 = vmatpush1.bf16.msra.mxu0 0
        %551 = vmatprep.mubr.bf16.mxu0 0
        %552 = vmatmul.mubr.bf16.gmra.mrb[0].mxu0 %v460
        %v553 = vpop.f32.mrb[0].mxu0
        %v554 = vadd.f32 0.0, %v553
        %v555 = vpop.f32.mrb[0].mxu0
        %v556 = vpop.f32.mrb[0].mxu0
        %v557 = vadd.f32 0.0, %v556
        %v558 = vpop.f32.mrb[0].mxu0
        %559 = vmatprep.mubr.bf16.mxu0 0
        %560 = vmatmul.mubr.bf16.gmra.mrb[0].mxu0 %v462
        %v561 = vpop.f32.mrb[0].mxu0
        %v562 = vadd.f32 0.0, %v561
        %v563 = vpop.f32.mrb[0].mxu0
        %v564 = vpop.f32.mrb[0].mxu0
        %v565 = vadd.f32 0.0, %v564
        %v566 = vpop.f32.mrb[0].mxu0
        %567 = vmatprep.mubr.bf16.mxu0 0
        %568 = vmatmul.mubr.bf16.gmra.mrb[0].mxu0 %v464
        %v569 = vpop.f32.mrb[0].mxu0
        %v570 = vadd.f32 0.0, %v569
        %v571 = vpop.f32.mrb[0].mxu0
        %v572 = vpop.f32.mrb[0].mxu0
        %v573 = vadd.f32 0.0, %v572
        %v574 = vpop.f32.mrb[0].mxu0
        %575 = vmatprep.mubr.bf16.mxu0 0
        %576 = vmatmul.mubr.bf16.gmra.mrb[0].mxu0 %v466
        %v577 = vpop.f32.mrb[0].mxu0
        %v578 = vadd.f32 0.0, %v577
        %v579 = vpop.f32.mrb[0].mxu0
        %v580 = vpop.f32.mrb[0].mxu0
        %v581 = vadd.f32 0.0, %v580
        %v582 = vpop.f32.mrb[0].mxu0
        %583 = vdwg.mxu0
        %vm586 = vcmask 1041408
        %v587 = vrot.slane %v412, 6
        %v588 = vrot.slane %v413, 6
        %v589 = vsel %vm586, %v587, %v588
        %v590 = vrot.slane %v414, 6
        %v591 = vsel %vm586, %v588, %v590
        %v592 = vrot.slane %v415, 6
        %v593 = vsel %vm586, %v590, %v592
        %v594 = vrot.slane %v416, 6
        %v595 = vsel %vm586, %v592, %v594
        %v616 = vunpack.c.l.b16 %v417
        %v617 = vunpack.c.l.b16 %v418
        %v618 = vunpack.c.l.b16 %v419
        %v619 = vunpack.c.l.b16 %v420
        %v620 = vunpack.c.l.b16 %v421
        %v621 = vunpack.c.l.b16 %v422
        %v622 = vunpack.c.l.b16 %v423
        %v623 = vunpack.c.l.b16 %v424
        %v624 = vunpack.c.l.b16 %v425
        %v625 = vunpack.c.l.b16 %v426
        %v626 = vunpack.c.l.b16 %v427
        %v627 = vunpack.c.l.b16 %v428
        %v628 = vunpack.c.l.b16 %v429
        %v629 = vunpack.c.l.b16 %v430
        %v630 = vunpack.c.l.b16 %v431
        %v631 = vunpack.c.l.b16 %v432
        %v632 = vpack.c.b16 %v617, %v616
        %v633 = vpack.c.b16 %v619, %v618
        %v634 = vpack.c.b16 %v621, %v620
        %v635 = vpack.c.b16 %v623, %v622
        %v636 = vpack.c.b16 %v625, %v624
        %v637 = vpack.c.b16 %v627, %v626
        %v638 = vpack.c.b16 %v629, %v628
        %v639 = vpack.c.b16 %v631, %v630
        %648 = vmatprep.subr.bf16.mxu0 0
        %649 = vmatpush1.bf16.msra.mxu0 %v632
        %650 = vmatprep.subr.bf16.mxu0 0
        %651 = vmatpush1.bf16.msra.mxu0 %v633
        %652 = vmatprep.subr.bf16.mxu0 0
        %653 = vmatpush1.bf16.msra.mxu0 %v634
        %654 = vmatprep.subr.bf16.mxu0 0
        %655 = vmatpush1.bf16.msra.mxu0 %v635
        %656 = vmatprep.subr.bf16.mxu0 0
        %657 = vmatpush1.bf16.msra.mxu0 %v636
        %658 = vmatprep.subr.bf16.mxu0 0
        %659 = vmatpush1.bf16.msra.mxu0 %v637
        %660 = vmatprep.subr.bf16.mxu0 0
        %661 = vmatpush1.bf16.msra.mxu0 %v638
        %662 = vmatprep.subr.bf16.mxu0 0
        %663 = vmatpush1.bf16.msra.mxu0 %v639
        %664 = vmatprep.subr.bf16.mxu0 0
        %665 = vmatpush1.bf16.msra.mxu0 0
        %666 = vmatprep.subr.bf16.mxu0 0
        %667 = vmatpush1.bf16.msra.mxu0 0
        %668 = vmatprep.subr.bf16.mxu0 0
        %669 = vmatpush1.bf16.msra.mxu0 0
        %670 = vmatprep.subr.bf16.mxu0 0
        %671 = vmatpush1.bf16.msra.mxu0 0
        %672 = vmatprep.subr.bf16.mxu0 0
        %673 = vmatpush1.bf16.msra.mxu0 0
        %674 = vmatprep.subr.bf16.mxu0 0
        %675 = vmatpush1.bf16.msra.mxu0 0
        %676 = vmatprep.subr.bf16.mxu0 0
        %677 = vmatpush1.bf16.msra.mxu0 0
        %678 = vmatprep.subr.bf16.mxu0 0
        %679 = vmatpush1.bf16.msra.mxu0 0
        %680 = vmatprep.mubr.bf16.mxu0 0
        %681 = vmatmul.mubr.bf16.gmra.mrb[0].mxu0 %v589
        %v682 = vpop.f32.mrb[0].mxu0
        %v683 = vadd.f32 %v554, %v682
        %v684 = vpop.f32.mrb[0].mxu0
        %v685 = vpop.f32.mrb[0].mxu0
        %v686 = vadd.f32 %v557, %v685
        %v687 = vpop.f32.mrb[0].mxu0
        %688 = vmatprep.mubr.bf16.mxu0 0
        %689 = vmatmul.mubr.bf16.gmra.mrb[0].mxu0 %v591
        %v690 = vpop.f32.mrb[0].mxu0
        %v691 = vadd.f32 %v562, %v690
        %v692 = vpop.f32.mrb[0].mxu0
        %v693 = vpop.f32.mrb[0].mxu0
        %v694 = vadd.f32 %v565, %v693
        %v695 = vpop.f32.mrb[0].mxu0
        %696 = vmatprep.mubr.bf16.mxu0 0
        %697 = vmatmul.mubr.bf16.gmra.mrb[0].mxu0 %v593
        %v698 = vpop.f32.mrb[0].mxu0
        %v699 = vadd.f32 %v570, %v698
        %v700 = vpop.f32.mrb[0].mxu0
        %v701 = vpop.f32.mrb[0].mxu0
        %v702 = vadd.f32 %v573, %v701
        %v703 = vpop.f32.mrb[0].mxu0
        %704 = vmatprep.mubr.bf16.mxu0 0
        %705 = vmatmul.mubr.bf16.gmra.mrb[0].mxu0 %v595
        %v706 = vpop.f32.mrb[0].mxu0
        %v707 = vadd.f32 %v578, %v706
        %v708 = vpop.f32.mrb[0].mxu0
        %v709 = vpop.f32.mrb[0].mxu0
        %v710 = vadd.f32 %v581, %v709
        %v711 = vpop.f32.mrb[0].mxu0
        %712 = vdwg.mxu0
        %v713 = vld [vmem:[#allocation2 + $0x20] sm:$0xff]
        %s714 = scalar_lea.vmem [#allocation7], 128
        %v715 = vld [vmem:[%s714] sm:$0xf]
        %v716 = vld [vmem:[%s714 + $0x4] sm:$0xf]
        %v717 = vld [vmem:[%s714 + $0x8] sm:$0xf]
        %v718 = vld [vmem:[%s714 + $0xc] sm:$0xf]
        %v719 = vld [vmem:[%s714 + $0x10] sm:$0xf]
        %v720 = vld [vmem:[%s714 + $0x14] sm:$0xf]
        %v721 = vld [vmem:[%s714 + $0x18] sm:$0xf]
        %v722 = vld [vmem:[%s714 + $0x1c] sm:$0xf]
        %v723 = vld [vmem:[%s714 + $0x20] sm:$0xf]
        %v724 = vld [vmem:[%s714 + $0x24] sm:$0xf]
        %v725 = vld [vmem:[%s714 + $0x28] sm:$0xf]
        %v726 = vld [vmem:[%s714 + $0x2c] sm:$0xf]
        %v727 = vld [vmem:[%s714 + $0x30] sm:$0xf]
        %v728 = vld [vmem:[%s714 + $0x34] sm:$0xf]
        %v729 = vld [vmem:[%s714 + $0x38] sm:$0xf]
        %v730 = vld [vmem:[%s714 + $0x3c] sm:$0xf]
        %v747 = vunpack.c.l.b16 %v715
        %v748 = vunpack.c.l.b16 %v716
        %v749 = vunpack.c.l.b16 %v717
        %v750 = vunpack.c.l.b16 %v718
        %v751 = vunpack.c.l.b16 %v719
        %v752 = vunpack.c.l.b16 %v720
        %v753 = vunpack.c.l.b16 %v721
        %v754 = vunpack.c.l.b16 %v722
        %v755 = vunpack.c.l.b16 %v723
        %v756 = vunpack.c.l.b16 %v724
        %v757 = vunpack.c.l.b16 %v725
        %v758 = vunpack.c.l.b16 %v726
        %v759 = vunpack.c.l.b16 %v727
        %v760 = vunpack.c.l.b16 %v728
        %v761 = vunpack.c.l.b16 %v729
        %v762 = vunpack.c.l.b16 %v730
        %v763 = vpack.c.b16 %v748, %v747
        %v764 = vpack.c.b16 %v750, %v749
        %v765 = vpack.c.b16 %v752, %v751
        %v766 = vpack.c.b16 %v754, %v753
        %v767 = vpack.c.b16 %v756, %v755
        %v768 = vpack.c.b16 %v758, %v757
        %v769 = vpack.c.b16 %v760, %v759
        %v770 = vpack.c.b16 %v762, %v761
        %779 = vmatprep.subr.bf16.mxu0 0
        %780 = vmatpush1.bf16.msra.mxu0 %v763
        %781 = vmatprep.subr.bf16.mxu0 0
        %782 = vmatpush1.bf16.msra.mxu0 %v764
        %783 = vmatprep.subr.bf16.mxu0 0
        %784 = vmatpush1.bf16.msra.mxu0 %v765
        %785 = vmatprep.subr.bf16.mxu0 0
        %786 = vmatpush1.bf16.msra.mxu0 %v766
        %787 = vmatprep.subr.bf16.mxu0 0
        %788 = vmatpush1.bf16.msra.mxu0 %v767
        %789 = vmatprep.subr.bf16.mxu0 0
        %790 = vmatpush1.bf16.msra.mxu0 %v768
        %791 = vmatprep.subr.bf16.mxu0 0
        %792 = vmatpush1.bf16.msra.mxu0 %v769
        %793 = vmatprep.subr.bf16.mxu0 0
        %794 = vmatpush1.bf16.msra.mxu0 %v770
        %795 = vmatprep.subr.bf16.mxu0 0
        %796 = vmatpush1.bf16.msra.mxu0 0
        %797 = vmatprep.subr.bf16.mxu0 0
        %798 = vmatpush1.bf16.msra.mxu0 0
        %799 = vmatprep.subr.bf16.mxu0 0
        %800 = vmatpush1.bf16.msra.mxu0 0
        %801 = vmatprep.subr.bf16.mxu0 0
        %802 = vmatpush1.bf16.msra.mxu0 0
        %803 = vmatprep.subr.bf16.mxu0 0
        %804 = vmatpush1.bf16.msra.mxu0 0
        %805 = vmatprep.subr.bf16.mxu0 0
        %806 = vmatpush1.bf16.msra.mxu0 0
        %807 = vmatprep.subr.bf16.mxu0 0
        %808 = vmatpush1.bf16.msra.mxu0 0
        %809 = vmatprep.subr.bf16.mxu0 0
        %810 = vmatpush1.bf16.msra.mxu0 0
        %811 = vmatprep.mubr.bf16.mxu0 0
        %812 = vmatmul.mubr.bf16.gmra.mrb[0].mxu0 %v413
        %v813 = vpop.f32.mrb[0].mxu0
        %v814 = vadd.f32 0.0, %v813
        %v815 = vpop.f32.mrb[0].mxu0
        %v816 = vpop.f32.mrb[0].mxu0
        %v817 = vadd.f32 0.0, %v816
        %v818 = vpop.f32.mrb[0].mxu0
        %819 = vmatprep.mubr.bf16.mxu0 0
        %820 = vmatmul.mubr.bf16.gmra.mrb[0].mxu0 %v414
        %v821 = vpop.f32.mrb[0].mxu0
        %v822 = vadd.f32 0.0, %v821
        %v823 = vpop.f32.mrb[0].mxu0
        %v824 = vpop.f32.mrb[0].mxu0
        %v825 = vadd.f32 0.0, %v824
        %v826 = vpop.f32.mrb[0].mxu0
        %827 = vmatprep.mubr.bf16.mxu0 0
        %828 = vmatmul.mubr.bf16.gmra.mrb[0].mxu0 %v415
        %v829 = vpop.f32.mrb[0].mxu0
        %v830 = vadd.f32 0.0, %v829
        %v831 = vpop.f32.mrb[0].mxu0
        %v832 = vpop.f32.mrb[0].mxu0
        %v833 = vadd.f32 0.0, %v832
        %v834 = vpop.f32.mrb[0].mxu0
        %835 = vmatprep.mubr.bf16.mxu0 0
        %836 = vmatmul.mubr.bf16.gmra.mrb[0].mxu0 %v713
        %v837 = vpop.f32.mrb[0].mxu0
        %v838 = vadd.f32 0.0, %v837
        %v839 = vpop.f32.mrb[0].mxu0
        %v840 = vpop.f32.mrb[0].mxu0
        %v841 = vadd.f32 0.0, %v840
        %v842 = vpop.f32.mrb[0].mxu0
        %843 = vdwg.mxu0
        %v844 = vadd.f32 %v683, %v814
        %v845 = vadd.f32 %v686, %v817
        %v846 = vadd.f32 %v691, %v822
        %v847 = vadd.f32 %v694, %v825
        %v848 = vadd.f32 %v699, %v830
        %v849 = vadd.f32 %v702, %v833
        %v850 = vadd.f32 %v707, %v838
        %v851 = vadd.f32 %v710, %v841
        %v852 = vld [vmem:[%s2] sm:$0x1]
        %v854 = vlaneseq
        %v855 = vshrl.u32 %v854, 7
        %v856 = vsub.s32 0, %v855
        %v857 = vrot.slane %v852, %v856
        %v859 = vadd.f32 %v844, %v857
        %v860 = vadd.f32 %v845, %v857
        %v861 = vadd.f32 %v846, %v857
        %v862 = vadd.f32 %v847, %v857
        %v863 = vadd.f32 %v848, %v857
        %v864 = vadd.f32 %v849, %v857
        %v865 = vadd.f32 %v850, %v857
        %v866 = vadd.f32 %v851, %v857
        %v867 = vmax.f32 %v859, 0.0
        %v868 = vmax.f32 %v860, 0.0
        %v869 = vmax.f32 %v861, 0.0
        %v870 = vmax.f32 %v862, 0.0
        %v871 = vmax.f32 %v863, 0.0
        %v872 = vmax.f32 %v864, 0.0
        %v873 = vmax.f32 %v865, 0.0
        %v874 = vmax.f32 %v866, 0.0
        %v875 = vpack.c.bf16 %v868, %v867
        %v876 = vpack.c.bf16 %v870, %v869
        %v877 = vpack.c.bf16 %v872, %v871
        %v878 = vpack.c.bf16 %v874, %v873
        %879 = vst [vmem:[#allocation3 + $0x8] sm:$0xff] %v875
        %880 = vst [vmem:[#allocation3 + $0x10] sm:$0xff] %v876
        %881 = vst [vmem:[#allocation3 + $0x18] sm:$0xff] %v877
        %882 = vst [vmem:[#allocation3 + $0x20] sm:$0xff] %v878
        %v883 = vld [vmem:[#allocation3] sm:$0xc0]
        %v884 = vld [vmem:[#allocation3 + $0x8] sm:$0xff]
        %v885 = vld [vmem:[#allocation3 + $0x10] sm:$0xff]
        %v886 = vld [vmem:[#allocation3 + $0x18] sm:$0xff]
        %v887 = vld [vmem:[#allocation3 + $0x20] sm:$0x3f]
        %v888 = vld [vmem:[#allocation9] sm:$0xf]
        %v889 = vld [vmem:[#allocation9 + $0x4] sm:$0xf]
        %v890 = vld [vmem:[#allocation9 + $0x8] sm:$0xf]
        %v891 = vld [vmem:[#allocation9 + $0xc] sm:$0xf]
        %v892 = vld [vmem:[#allocation9 + $0x10] sm:$0xf]
        %v893 = vld [vmem:[#allocation9 + $0x14] sm:$0xf]
        %v894 = vld [vmem:[#allocation9 + $0x18] sm:$0xf]
        %v895 = vld [vmem:[#allocation9 + $0x1c] sm:$0xf]
        %v896 = vld [vmem:[#allocation9 + $0x20] sm:$0xf]
        %v897 = vld [vmem:[#allocation9 + $0x24] sm:$0xf]
        %v898 = vld [vmem:[#allocation9 + $0x28] sm:$0xf]
        %v899 = vld [vmem:[#allocation9 + $0x2c] sm:$0xf]
        %v900 = vld [vmem:[#allocation9 + $0x30] sm:$0xf]
        %v901 = vld [vmem:[#allocation9 + $0x34] sm:$0xf]
        %v902 = vld [vmem:[#allocation9 + $0x38] sm:$0xf]
        %v903 = vld [vmem:[#allocation9 + $0x3c] sm:$0xf]
        %v904 = vld [vmem:[#allocation3] sm:$0x80]
        %v905 = vld [vmem:[#allocation3 + $0x20] sm:$0x7f]
        %s906 = scalar_lea.vmem [#allocation9], 64
        %v907 = vld [vmem:[%s906] sm:$0xf]
        %v908 = vld [vmem:[%s906 + $0x4] sm:$0xf]
        %v909 = vld [vmem:[%s906 + $0x8] sm:$0xf]
        %v910 = vld [vmem:[%s906 + $0xc] sm:$0xf]
        %v911 = vld [vmem:[%s906 + $0x10] sm:$0xf]
        %v912 = vld [vmem:[%s906 + $0x14] sm:$0xf]
        %v913 = vld [vmem:[%s906 + $0x18] sm:$0xf]
        %v914 = vld [vmem:[%s906 + $0x1c] sm:$0xf]
        %v915 = vld [vmem:[%s906 + $0x20] sm:$0xf]
        %v916 = vld [vmem:[%s906 + $0x24] sm:$0xf]
        %v917 = vld [vmem:[%s906 + $0x28] sm:$0xf]
        %v918 = vld [vmem:[%s906 + $0x2c] sm:$0xf]
        %v919 = vld [vmem:[%s906 + $0x30] sm:$0xf]
        %v920 = vld [vmem:[%s906 + $0x34] sm:$0xf]
        %v921 = vld [vmem:[%s906 + $0x38] sm:$0xf]
        %v922 = vld [vmem:[%s906 + $0x3c] sm:$0xf]
        %v928 = vrot.slane %v904, 7
        %v929 = vrot.slane %v884, 7
        %v930 = vsel %vm457, %v928, %v929
        %v931 = vrot.slane %v885, 7
        %v932 = vsel %vm457, %v929, %v931
        %v933 = vrot.slane %v886, 7
        %v934 = vsel %vm457, %v931, %v933
        %v935 = vrot.slane %v905, 7
        %v936 = vsel %vm457, %v933, %v935
        %v957 = vunpack.c.l.b16 %v907
        %v958 = vunpack.c.l.b16 %v908
        %v959 = vunpack.c.l.b16 %v909
        %v960 = vunpack.c.l.b16 %v910
        %v961 = vunpack.c.l.b16 %v911
        %v962 = vunpack.c.l.b16 %v912
        %v963 = vunpack.c.l.b16 %v913
        %v964 = vunpack.c.l.b16 %v914
        %v965 = vunpack.c.l.b16 %v915
        %v966 = vunpack.c.l.b16 %v916
        %v967 = vunpack.c.l.b16 %v917
        %v968 = vunpack.c.l.b16 %v918
        %v969 = vunpack.c.l.b16 %v919
        %v970 = vunpack.c.l.b16 %v920
        %v971 = vunpack.c.l.b16 %v921
        %v972 = vunpack.c.l.b16 %v922
        %v973 = vpack.c.b16 %v958, %v957
        %v974 = vpack.c.b16 %v960, %v959
        %v975 = vpack.c.b16 %v962, %v961
        %v976 = vpack.c.b16 %v964, %v963
        %v977 = vpack.c.b16 %v966, %v965
        %v978 = vpack.c.b16 %v968, %v967
        %v979 = vpack.c.b16 %v970, %v969
        %v980 = vpack.c.b16 %v972, %v971
        %989 = vmatprep.subr.bf16.mxu0 0
        %990 = vmatpush1.bf16.msra.mxu0 %v973
        %991 = vmatprep.subr.bf16.mxu0 0
        %992 = vmatpush1.bf16.msra.mxu0 %v974
        %993 = vmatprep.subr.bf16.mxu0 0
        %994 = vmatpush1.bf16.msra.mxu0 %v975
        %995 = vmatprep.subr.bf16.mxu0 0
        %996 = vmatpush1.bf16.msra.mxu0 %v976
        %997 = vmatprep.subr.bf16.mxu0 0
        %998 = vmatpush1.bf16.msra.mxu0 %v977
        %999 = vmatprep.subr.bf16.mxu0 0
        %1000 = vmatpush1.bf16.msra.mxu0 %v978
        %1001 = vmatprep.subr.bf16.mxu0 0
        %1002 = vmatpush1.bf16.msra.mxu0 %v979
        %1003 = vmatprep.subr.bf16.mxu0 0
        %1004 = vmatpush1.bf16.msra.mxu0 %v980
        %1005 = vmatprep.subr.bf16.mxu0 0
        %1006 = vmatpush1.bf16.msra.mxu0 0
        %1007 = vmatprep.subr.bf16.mxu0 0
        %1008 = vmatpush1.bf16.msra.mxu0 0
        %1009 = vmatprep.subr.bf16.mxu0 0
        %1010 = vmatpush1.bf16.msra.mxu0 0
        %1011 = vmatprep.subr.bf16.mxu0 0
        %1012 = vmatpush1.bf16.msra.mxu0 0
        %1013 = vmatprep.subr.bf16.mxu0 0
        %1014 = vmatpush1.bf16.msra.mxu0 0
        %1015 = vmatprep.subr.bf16.mxu0 0
        %1016 = vmatpush1.bf16.msra.mxu0 0
        %1017 = vmatprep.subr.bf16.mxu0 0
        %1018 = vmatpush1.bf16.msra.mxu0 0
        %1019 = vmatprep.subr.bf16.mxu0 0
        %1020 = vmatpush1.bf16.msra.mxu0 0
        %1021 = vmatprep.mubr.bf16.mxu0 0
        %1022 = vmatmul.mubr.bf16.gmra.mrb[0].mxu0 %v930
        %v1023 = vpop.f32.mrb[0].mxu0
        %v1024 = vadd.f32 0.0, %v1023
        %v1025 = vpop.f32.mrb[0].mxu0
        %v1026 = vpop.f32.mrb[0].mxu0
        %v1027 = vadd.f32 0.0, %v1026
        %v1028 = vpop.f32.mrb[0].mxu0
        %1029 = vmatprep.mubr.bf16.mxu0 0
        %1030 = vmatmul.mubr.bf16.gmra.mrb[0].mxu0 %v932
        %v1031 = vpop.f32.mrb[0].mxu0
        %v1032 = vadd.f32 0.0, %v1031
        %v1033 = vpop.f32.mrb[0].mxu0
        %v1034 = vpop.f32.mrb[0].mxu0
        %v1035 = vadd.f32 0.0, %v1034
        %v1036 = vpop.f32.mrb[0].mxu0
        %1037 = vmatprep.mubr.bf16.mxu0 0
        %1038 = vmatmul.mubr.bf16.gmra.mrb[0].mxu0 %v934
        %v1039 = vpop.f32.mrb[0].mxu0
        %v1040 = vadd.f32 0.0, %v1039
        %v1041 = vpop.f32.mrb[0].mxu0
        %v1042 = vpop.f32.mrb[0].mxu0
        %v1043 = vadd.f32 0.0, %v1042
        %v1044 = vpop.f32.mrb[0].mxu0
        %1045 = vmatprep.mubr.bf16.mxu0 0
        %1046 = vmatmul.mubr.bf16.gmra.mrb[0].mxu0 %v936
        %v1047 = vpop.f32.mrb[0].mxu0
        %v1048 = vadd.f32 0.0, %v1047
        %v1049 = vpop.f32.mrb[0].mxu0
        %v1050 = vpop.f32.mrb[0].mxu0
        %v1051 = vadd.f32 0.0, %v1050
        %v1052 = vpop.f32.mrb[0].mxu0
        %1053 = vdwg.mxu0
        %v1056 = vrot.slane %v883, 6
        %v1057 = vrot.slane %v884, 6
        %v1058 = vsel %vm586, %v1056, %v1057
        %v1059 = vrot.slane %v885, 6
        %v1060 = vsel %vm586, %v1057, %v1059
        %v1061 = vrot.slane %v886, 6
        %v1062 = vsel %vm586, %v1059, %v1061
        %v1063 = vrot.slane %v887, 6
        %v1064 = vsel %vm586, %v1061, %v1063
        %v1085 = vunpack.c.l.b16 %v888
        %v1086 = vunpack.c.l.b16 %v889
        %v1087 = vunpack.c.l.b16 %v890
        %v1088 = vunpack.c.l.b16 %v891
        %v1089 = vunpack.c.l.b16 %v892
        %v1090 = vunpack.c.l.b16 %v893
        %v1091 = vunpack.c.l.b16 %v894
        %v1092 = vunpack.c.l.b16 %v895
        %v1093 = vunpack.c.l.b16 %v896
        %v1094 = vunpack.c.l.b16 %v897
        %v1095 = vunpack.c.l.b16 %v898
        %v1096 = vunpack.c.l.b16 %v899
        %v1097 = vunpack.c.l.b16 %v900
        %v1098 = vunpack.c.l.b16 %v901
        %v1099 = vunpack.c.l.b16 %v902
        %v1100 = vunpack.c.l.b16 %v903
        %v1101 = vpack.c.b16 %v1086, %v1085
        %v1102 = vpack.c.b16 %v1088, %v1087
        %v1103 = vpack.c.b16 %v1090, %v1089
        %v1104 = vpack.c.b16 %v1092, %v1091
        %v1105 = vpack.c.b16 %v1094, %v1093
        %v1106 = vpack.c.b16 %v1096, %v1095
        %v1107 = vpack.c.b16 %v1098, %v1097
        %v1108 = vpack.c.b16 %v1100, %v1099
        %1117 = vmatprep.subr.bf16.mxu0 0
        %1118 = vmatpush1.bf16.msra.mxu0 %v1101
        %1119 = vmatprep.subr.bf16.mxu0 0
        %1120 = vmatpush1.bf16.msra.mxu0 %v1102
        %1121 = vmatprep.subr.bf16.mxu0 0
        %1122 = vmatpush1.bf16.msra.mxu0 %v1103
        %1123 = vmatprep.subr.bf16.mxu0 0
        %1124 = vmatpush1.bf16.msra.mxu0 %v1104
        %1125 = vmatprep.subr.bf16.mxu0 0
        %1126 = vmatpush1.bf16.msra.mxu0 %v1105
        %1127 = vmatprep.subr.bf16.mxu0 0
        %1128 = vmatpush1.bf16.msra.mxu0 %v1106
        %1129 = vmatprep.subr.bf16.mxu0 0
        %1130 = vmatpush1.bf16.msra.mxu0 %v1107
        %1131 = vmatprep.subr.bf16.mxu0 0
        %1132 = vmatpush1.bf16.msra.mxu0 %v1108
        %1133 = vmatprep.subr.bf16.mxu0 0
        %1134 = vmatpush1.bf16.msra.mxu0 0
        %1135 = vmatprep.subr.bf16.mxu0 0
        %1136 = vmatpush1.bf16.msra.mxu0 0
        %1137 = vmatprep.subr.bf16.mxu0 0
        %1138 = vmatpush1.bf16.msra.mxu0 0
        %1139 = vmatprep.subr.bf16.mxu0 0
        %1140 = vmatpush1.bf16.msra.mxu0 0
        %1141 = vmatprep.subr.bf16.mxu0 0
        %1142 = vmatpush1.bf16.msra.mxu0 0
        %1143 = vmatprep.subr.bf16.mxu0 0
        %1144 = vmatpush1.bf16.msra.mxu0 0
        %1145 = vmatprep.subr.bf16.mxu0 0
        %1146 = vmatpush1.bf16.msra.mxu0 0
        %1147 = vmatprep.subr.bf16.mxu0 0
        %1148 = vmatpush1.bf16.msra.mxu0 0
        %1149 = vmatprep.mubr.bf16.mxu0 0
        %1150 = vmatmul.mubr.bf16.gmra.mrb[0].mxu0 %v1058
        %v1151 = vpop.f32.mrb[0].mxu0
        %v1152 = vadd.f32 %v1024, %v1151
        %v1153 = vpop.f32.mrb[0].mxu0
        %v1154 = vpop.f32.mrb[0].mxu0
        %v1155 = vadd.f32 %v1027, %v1154
        %v1156 = vpop.f32.mrb[0].mxu0
        %1157 = vmatprep.mubr.bf16.mxu0 0
        %1158 = vmatmul.mubr.bf16.gmra.mrb[0].mxu0 %v1060
        %v1159 = vpop.f32.mrb[0].mxu0
        %v1160 = vadd.f32 %v1032, %v1159
        %v1161 = vpop.f32.mrb[0].mxu0
        %v1162 = vpop.f32.mrb[0].mxu0
        %v1163 = vadd.f32 %v1035, %v1162
        %v1164 = vpop.f32.mrb[0].mxu0
        %1165 = vmatprep.mubr.bf16.mxu0 0
        %1166 = vmatmul.mubr.bf16.gmra.mrb[0].mxu0 %v1062
        %v1167 = vpop.f32.mrb[0].mxu0
        %v1168 = vadd.f32 %v1040, %v1167
        %v1169 = vpop.f32.mrb[0].mxu0
        %v1170 = vpop.f32.mrb[0].mxu0
        %v1171 = vadd.f32 %v1043, %v1170
        %v1172 = vpop.f32.mrb[0].mxu0
        %1173 = vmatprep.mubr.bf16.mxu0 0
        %1174 = vmatmul.mubr.bf16.gmra.mrb[0].mxu0 %v1064
        %v1175 = vpop.f32.mrb[0].mxu0
        %v1176 = vadd.f32 %v1048, %v1175
        %v1177 = vpop.f32.mrb[0].mxu0
        %v1178 = vpop.f32.mrb[0].mxu0
        %v1179 = vadd.f32 %v1051, %v1178
        %v1180 = vpop.f32.mrb[0].mxu0
        %1181 = vdwg.mxu0
        %v1182 = vld [vmem:[#allocation3 + $0x20] sm:$0xff]
        %s1183 = scalar_lea.vmem [#allocation9], 128
        %v1184 = vld [vmem:[%s1183] sm:$0xf]
        %v1185 = vld [vmem:[%s1183 + $0x4] sm:$0xf]
        %v1186 = vld [vmem:[%s1183 + $0x8] sm:$0xf]
        %v1187 = vld [vmem:[%s1183 + $0xc] sm:$0xf]
        %v1188 = vld [vmem:[%s1183 + $0x10] sm:$0xf]
        %v1189 = vld [vmem:[%s1183 + $0x14] sm:$0xf]
        %v1190 = vld [vmem:[%s1183 + $0x18] sm:$0xf]
        %v1191 = vld [vmem:[%s1183 + $0x1c] sm:$0xf]
        %v1192 = vld [vmem:[%s1183 + $0x20] sm:$0xf]
        %v1193 = vld [vmem:[%s1183 + $0x24] sm:$0xf]
        %v1194 = vld [vmem:[%s1183 + $0x28] sm:$0xf]
        %v1195 = vld [vmem:[%s1183 + $0x2c] sm:$0xf]
        %v1196 = vld [vmem:[%s1183 + $0x30] sm:$0xf]
        %v1197 = vld [vmem:[%s1183 + $0x34] sm:$0xf]
        %v1198 = vld [vmem:[%s1183 + $0x38] sm:$0xf]
        %v1199 = vld [vmem:[%s1183 + $0x3c] sm:$0xf]
        %v1216 = vunpack.c.l.b16 %v1184
        %v1217 = vunpack.c.l.b16 %v1185
        %v1218 = vunpack.c.l.b16 %v1186
        %v1219 = vunpack.c.l.b16 %v1187
        %v1220 = vunpack.c.l.b16 %v1188
        %v1221 = vunpack.c.l.b16 %v1189
        %v1222 = vunpack.c.l.b16 %v1190
        %v1223 = vunpack.c.l.b16 %v1191
        %v1224 = vunpack.c.l.b16 %v1192
        %v1225 = vunpack.c.l.b16 %v1193
        %v1226 = vunpack.c.l.b16 %v1194
        %v1227 = vunpack.c.l.b16 %v1195
        %v1228 = vunpack.c.l.b16 %v1196
        %v1229 = vunpack.c.l.b16 %v1197
        %v1230 = vunpack.c.l.b16 %v1198
        %v1231 = vunpack.c.l.b16 %v1199
        %v1232 = vpack.c.b16 %v1217, %v1216
        %v1233 = vpack.c.b16 %v1219, %v1218
        %v1234 = vpack.c.b16 %v1221, %v1220
        %v1235 = vpack.c.b16 %v1223, %v1222
        %v1236 = vpack.c.b16 %v1225, %v1224
        %v1237 = vpack.c.b16 %v1227, %v1226
        %v1238 = vpack.c.b16 %v1229, %v1228
        %v1239 = vpack.c.b16 %v1231, %v1230
        %1248 = vmatprep.subr.bf16.mxu0 0
        %1249 = vmatpush1.bf16.msra.mxu0 %v1232
        %1250 = vmatprep.subr.bf16.mxu0 0
        %1251 = vmatpush1.bf16.msra.mxu0 %v1233
        %1252 = vmatprep.subr.bf16.mxu0 0
        %1253 = vmatpush1.bf16.msra.mxu0 %v1234
        %1254 = vmatprep.subr.bf16.mxu0 0
        %1255 = vmatpush1.bf16.msra.mxu0 %v1235
        %1256 = vmatprep.subr.bf16.mxu0 0
        %1257 = vmatpush1.bf16.msra.mxu0 %v1236
        %1258 = vmatprep.subr.bf16.mxu0 0
        %1259 = vmatpush1.bf16.msra.mxu0 %v1237
        %1260 = vmatprep.subr.bf16.mxu0 0
        %1261 = vmatpush1.bf16.msra.mxu0 %v1238
        %1262 = vmatprep.subr.bf16.mxu0 0
        %1263 = vmatpush1.bf16.msra.mxu0 %v1239
        %1264 = vmatprep.subr.bf16.mxu0 0
        %1265 = vmatpush1.bf16.msra.mxu0 0
        %1266 = vmatprep.subr.bf16.mxu0 0
        %1267 = vmatpush1.bf16.msra.mxu0 0
        %1268 = vmatprep.subr.bf16.mxu0 0
        %1269 = vmatpush1.bf16.msra.mxu0 0
        %1270 = vmatprep.subr.bf16.mxu0 0
        %1271 = vmatpush1.bf16.msra.mxu0 0
        %1272 = vmatprep.subr.bf16.mxu0 0
        %1273 = vmatpush1.bf16.msra.mxu0 0
        %1274 = vmatprep.subr.bf16.mxu0 0
        %1275 = vmatpush1.bf16.msra.mxu0 0
        %1276 = vmatprep.subr.bf16.mxu0 0
        %1277 = vmatpush1.bf16.msra.mxu0 0
        %1278 = vmatprep.subr.bf16.mxu0 0
        %1279 = vmatpush1.bf16.msra.mxu0 0
        %1280 = vmatprep.mubr.bf16.mxu0 0
        %1281 = vmatmul.mubr.bf16.gmra.mrb[0].mxu0 %v884
        %v1282 = vpop.f32.mrb[0].mxu0
        %v1283 = vadd.f32 0.0, %v1282
        %v1284 = vpop.f32.mrb[0].mxu0
        %v1285 = vpop.f32.mrb[0].mxu0
        %v1286 = vadd.f32 0.0, %v1285
        %v1287 = vpop.f32.mrb[0].mxu0
        %1288 = vmatprep.mubr.bf16.mxu0 0
        %1289 = vmatmul.mubr.bf16.gmra.mrb[0].mxu0 %v885
        %v1290 = vpop.f32.mrb[0].mxu0
        %v1291 = vadd.f32 0.0, %v1290
        %v1292 = vpop.f32.mrb[0].mxu0
        %v1293 = vpop.f32.mrb[0].mxu0
        %v1294 = vadd.f32 0.0, %v1293
        %v1295 = vpop.f32.mrb[0].mxu0
        %1296 = vmatprep.mubr.bf16.mxu0 0
        %1297 = vmatmul.mubr.bf16.gmra.mrb[0].mxu0 %v886
        %v1298 = vpop.f32.mrb[0].mxu0
        %v1299 = vadd.f32 0.0, %v1298
        %v1300 = vpop.f32.mrb[0].mxu0
        %v1301 = vpop.f32.mrb[0].mxu0
        %v1302 = vadd.f32 0.0, %v1301
        %v1303 = vpop.f32.mrb[0].mxu0
        %1304 = vmatprep.mubr.bf16.mxu0 0
        %1305 = vmatmul.mubr.bf16.gmra.mrb[0].mxu0 %v1182
        %v1306 = vpop.f32.mrb[0].mxu0
        %v1307 = vadd.f32 0.0, %v1306
        %v1308 = vpop.f32.mrb[0].mxu0
        %v1309 = vpop.f32.mrb[0].mxu0
        %v1310 = vadd.f32 0.0, %v1309
        %v1311 = vpop.f32.mrb[0].mxu0
        %1312 = vdwg.mxu0
        %v1313 = vadd.f32 %v1152, %v1283
        %v1314 = vadd.f32 %v1155, %v1286
        %v1315 = vadd.f32 %v1160, %v1291
        %v1316 = vadd.f32 %v1163, %v1294
        %v1317 = vadd.f32 %v1168, %v1299
        %v1318 = vadd.f32 %v1171, %v1302
        %v1319 = vadd.f32 %v1176, %v1307
        %v1320 = vadd.f32 %v1179, %v1310
        %v1321 = vld [vmem:[%s4] sm:$0x1]
        %v1323 = vlaneseq
        %v1324 = vshrl.u32 %v1323, 7
        %v1325 = vsub.s32 0, %v1324
        %v1326 = vrot.slane %v1321, %v1325
        %v1328 = vadd.f32 %v1313, %v1326
        %v1329 = vadd.f32 %v1314, %v1326
        %v1330 = vadd.f32 %v1315, %v1326
        %v1331 = vadd.f32 %v1316, %v1326
        %v1332 = vadd.f32 %v1317, %v1326
        %v1333 = vadd.f32 %v1318, %v1326
        %v1334 = vadd.f32 %v1319, %v1326
        %v1335 = vadd.f32 %v1320, %v1326
        %v1336 = vmax.f32 %v1328, 0.0
        %v1337 = vmax.f32 %v1329, 0.0
        %v1338 = vmax.f32 %v1330, 0.0
        %v1339 = vmax.f32 %v1331, 0.0
        %v1340 = vmax.f32 %v1332, 0.0
        %v1341 = vmax.f32 %v1333, 0.0
        %v1342 = vmax.f32 %v1334, 0.0
        %v1343 = vmax.f32 %v1335, 0.0
        %v1344 = vld [vmem:[#allocation10] sm:$0xf]
        %v1345 = vld [vmem:[#allocation10 + $0x4] sm:$0xf]
        %v1346 = vld [vmem:[#allocation10 + $0x8] sm:$0xf]
        %v1347 = vld [vmem:[#allocation10 + $0xc] sm:$0xf]
        %v1348 = vld [vmem:[#allocation10 + $0x10] sm:$0xf]
        %v1349 = vld [vmem:[#allocation10 + $0x14] sm:$0xf]
        %v1350 = vld [vmem:[#allocation10 + $0x18] sm:$0xf]
        %v1351 = vld [vmem:[#allocation10 + $0x1c] sm:$0xf]
        %v1352 = vld [vmem:[#allocation10 + $0x20] sm:$0xf]
        %v1353 = vld [vmem:[#allocation10 + $0x24] sm:$0xf]
        %v1354 = vld [vmem:[#allocation10 + $0x28] sm:$0xf]
        %v1355 = vld [vmem:[#allocation10 + $0x2c] sm:$0xf]
        %v1356 = vld [vmem:[#allocation10 + $0x30] sm:$0xf]
        %v1357 = vld [vmem:[#allocation10 + $0x34] sm:$0xf]
        %v1358 = vld [vmem:[#allocation10 + $0x38] sm:$0xf]
        %v1359 = vld [vmem:[#allocation10 + $0x3c] sm:$0xf]
        %v1360 = vld [vmem:[%s6] sm:$0x1]
        %v1362 = vlaneseq
        %v1363 = vshrl.u32 %v1362, 7
        %v1364 = vsub.s32 0, %v1363
        %v1365 = vrot.slane %v1360, %v1364
        %v1383 = vunpack.c.l.b16 %v1344
        %v1384 = vunpack.c.l.b16 %v1345
        %v1385 = vunpack.c.l.b16 %v1346
        %v1386 = vunpack.c.l.b16 %v1347
        %v1387 = vunpack.c.l.b16 %v1348
        %v1388 = vunpack.c.l.b16 %v1349
        %v1389 = vunpack.c.l.b16 %v1350
        %v1390 = vunpack.c.l.b16 %v1351
        %v1391 = vunpack.c.l.b16 %v1352
        %v1392 = vunpack.c.l.b16 %v1353
        %v1393 = vunpack.c.l.b16 %v1354
        %v1394 = vunpack.c.l.b16 %v1355
        %v1395 = vunpack.c.l.b16 %v1356
        %v1396 = vunpack.c.l.b16 %v1357
        %v1397 = vunpack.c.l.b16 %v1358
        %v1398 = vunpack.c.l.b16 %v1359
        %v1399 = vpack.c.b16 %v1384, %v1383
        %v1400 = vpack.c.b16 %v1386, %v1385
        %v1401 = vpack.c.b16 %v1388, %v1387
        %v1402 = vpack.c.b16 %v1390, %v1389
        %v1403 = vpack.c.b16 %v1392, %v1391
        %v1404 = vpack.c.b16 %v1394, %v1393
        %v1405 = vpack.c.b16 %v1396, %v1395
        %v1406 = vpack.c.b16 %v1398, %v1397
        %1415 = vmatprep.subr.bf16.mxu0 0
        %1416 = vmatpush1.bf16.msra.mxu0 %v1399
        %1417 = vmatprep.subr.bf16.mxu0 0
        %1418 = vmatpush1.bf16.msra.mxu0 %v1400
        %1419 = vmatprep.subr.bf16.mxu0 0
        %1420 = vmatpush1.bf16.msra.mxu0 %v1401
        %1421 = vmatprep.subr.bf16.mxu0 0
        %1422 = vmatpush1.bf16.msra.mxu0 %v1402
        %1423 = vmatprep.subr.bf16.mxu0 0
        %1424 = vmatpush1.bf16.msra.mxu0 %v1403
        %1425 = vmatprep.subr.bf16.mxu0 0
        %1426 = vmatpush1.bf16.msra.mxu0 %v1404
        %1427 = vmatprep.subr.bf16.mxu0 0
        %1428 = vmatpush1.bf16.msra.mxu0 %v1405
        %1429 = vmatprep.subr.bf16.mxu0 0
        %1430 = vmatpush1.bf16.msra.mxu0 %v1406
        %1431 = vmatprep.subr.bf16.mxu0 0
        %1432 = vmatpush1.bf16.msra.mxu0 0
        %1433 = vmatprep.subr.bf16.mxu0 0
        %1434 = vmatpush1.bf16.msra.mxu0 0
        %1435 = vmatprep.subr.bf16.mxu0 0
        %1436 = vmatpush1.bf16.msra.mxu0 0
        %1437 = vmatprep.subr.bf16.mxu0 0
        %1438 = vmatpush1.bf16.msra.mxu0 0
        %1439 = vmatprep.subr.bf16.mxu0 0
        %1440 = vmatpush1.bf16.msra.mxu0 0
        %1441 = vmatprep.subr.bf16.mxu0 0
        %1442 = vmatpush1.bf16.msra.mxu0 0
        %1443 = vmatprep.subr.bf16.mxu0 0
        %1444 = vmatpush1.bf16.msra.mxu0 0
        %1445 = vmatprep.subr.bf16.mxu0 0
        %1446 = vmatpush1.bf16.msra.mxu0 0
        %1447 = vmatprep.mubr.bf16.mxu0 0
        %1448 = vmatmul.mubr.bf16.gmra.mrb[0].mxu0 %v400
        %v1449 = vpop.f32.mrb[0].mxu0
        %v1450 = vadd.f32 %v1365, %v1449
        %v1451 = vpop.f32.mrb[0].mxu0
        %v1452 = vpop.f32.mrb[0].mxu0
        %v1453 = vadd.f32 %v1365, %v1452
        %v1454 = vpop.f32.mrb[0].mxu0
        %1455 = vmatprep.mubr.bf16.mxu0 0
        %1456 = vmatmul.mubr.bf16.gmra.mrb[0].mxu0 %v401
        %v1457 = vpop.f32.mrb[0].mxu0
        %v1458 = vadd.f32 %v1365, %v1457
        %v1459 = vpop.f32.mrb[0].mxu0
        %v1460 = vpop.f32.mrb[0].mxu0
        %v1461 = vadd.f32 %v1365, %v1460
        %v1462 = vpop.f32.mrb[0].mxu0
        %1463 = vmatprep.mubr.bf16.mxu0 0
        %1464 = vmatmul.mubr.bf16.gmra.mrb[0].mxu0 %v402
        %v1465 = vpop.f32.mrb[0].mxu0
        %v1466 = vadd.f32 %v1365, %v1465
        %v1467 = vpop.f32.mrb[0].mxu0
        %v1468 = vpop.f32.mrb[0].mxu0
        %v1469 = vadd.f32 %v1365, %v1468
        %v1470 = vpop.f32.mrb[0].mxu0
        %1471 = vmatprep.mubr.bf16.mxu0 0
        %1472 = vmatmul.mubr.bf16.gmra.mrb[0].mxu0 %v403
        %v1473 = vpop.f32.mrb[0].mxu0
        %v1474 = vadd.f32 %v1365, %v1473
        %v1475 = vpop.f32.mrb[0].mxu0
        %v1476 = vpop.f32.mrb[0].mxu0
        %v1477 = vadd.f32 %v1365, %v1476
        %v1478 = vpop.f32.mrb[0].mxu0
        %1479 = vdwg.mxu0
        %v1480 = vadd.f32 %v1336, %v1450
        %v1481 = vadd.f32 %v1337, %v1453
        %v1482 = vadd.f32 %v1338, %v1458
        %v1483 = vadd.f32 %v1339, %v1461
        %v1484 = vadd.f32 %v1340, %v1466
        %v1485 = vadd.f32 %v1341, %v1469
        %v1486 = vadd.f32 %v1342, %v1474
        %v1487 = vadd.f32 %v1343, %v1477
        %v1488 = vmax.f32 %v1480, 0.0
        %v1489 = vmax.f32 %v1481, 0.0
        %v1490 = vmax.f32 %v1482, 0.0
        %v1491 = vmax.f32 %v1483, 0.0
        %v1492 = vmax.f32 %v1484, 0.0
        %v1493 = vmax.f32 %v1485, 0.0
        %v1494 = vmax.f32 %v1486, 0.0
        %v1495 = vmax.f32 %v1487, 0.0
        %v1496 = vpack.c.bf16 %v1489, %v1488
        %v1497 = vpack.c.bf16 %v1491, %v1490
        %v1498 = vpack.c.bf16 %v1493, %v1492
        %v1499 = vpack.c.bf16 %v1495, %v1494
        %v1504 = vunpack.c.l.b16 %v1496
        %v1505 = vunpack.c.h.b16 %v1496
        %v1506 = vunpack.c.l.b16 %v1497
        %v1507 = vunpack.c.h.b16 %v1497
        %v1508 = vunpack.c.l.b16 %v1498
        %v1509 = vunpack.c.h.b16 %v1498
        %v1510 = vunpack.c.l.b16 %v1499
        %v1511 = vunpack.c.h.b16 %v1499
        %v1512 = vpack.c.b16 %v1504, %v1504
        %v1513 = vpack.c.b16 %v1505, %v1505
        %v1514 = vpack.c.b16 %v1506, %v1506
        %v1515 = vpack.c.b16 %v1507, %v1507
        %v1516 = vpack.c.b16 %v1508, %v1508
        %v1517 = vpack.c.b16 %v1509, %v1509
        %v1518 = vpack.c.b16 %v1510, %v1510
        %v1519 = vpack.c.b16 %v1511, %v1511
        %1528 = vst [vmem:[%s358] sm:$0xf] %v1512
        %1529 = vst [vmem:[%s358 + $0x4] sm:$0xf] %v1513
        %1530 = vst [vmem:[%s358 + $0x8] sm:$0xf] %v1514
        %1531 = vst [vmem:[%s358 + $0xc] sm:$0xf] %v1515
        %1532 = vst [vmem:[%s358 + $0x10] sm:$0xf] %v1516
        %1533 = vst [vmem:[%s358 + $0x14] sm:$0xf] %v1517
        %1534 = vst [vmem:[%s358 + $0x18] sm:$0xf] %v1518
        %1535 = vst [vmem:[%s358 + $0x1c] sm:$0xf] %v1519
        %s1536 = sand.u32 %s202, 1
        %s1537 = scalar_lea.sflag [#allocation6], %s1536
        %s1538 = sand.u32 %s202, 1
        %s1539 = smul.addr %s1538, 32
        %s1540 = scalar_lea.vmem [#allocation12], %s1539
        // Predicated region
        $region73: #{tpu_custom_call.1} parent=47 // pred_check
          %p1541 = pneg %p212
        $region74: #{tpu_custom_call.1} parent=47 // pred_check_branch
          %1543 = sbr.rel (%p1541) target = $region76
        $region75: #{tpu_custom_call.1} parent=47 // pred_region
          %s1544 = smul.u32 8, %s31
          %s1546 = ssub.s32 512, 512
          %1547 = vsyncadd %s1537, %s1546
          %s1548 = smul.addr %s30, 16
          %s1549 = sadd.s32 %s1544, %s1548
          %s1550 = smul.addr %s1549, 64
          %s1551 = scalar_lea.hbm %s7, %s1550
          %s1552 = sshll.u32 %s1540, 4
          %s1553 = int_to_ptr.vmem [resolvable:$true] %s1552
          %1558 = dma.vmem_to_hbm [thread:$0]  %s1553, 512, %s1551, %s1537, 64, 64, 4
        $region76: #{tpu_custom_call.1} parent=47 // pred_fallthru
          _
      $region48: #{tpu_custom_call.1} parent=5 // pred_fallthru
        _
      %p1559 = scmp.le.s32.totalorder 2, %s21
      // Predicated region
      $region77: #{tpu_custom_call.1} parent=5 // pred_check
        %p1560 = pneg %p1559
      $region78: #{tpu_custom_call.1} parent=5 // pred_check_branch
        %1562 = sbr.rel (%p1560) target = $region80
      $region79: #{tpu_custom_call.1} parent=5 // pred_region
        %s1563 = ssub.s32 %s21, 2
        // Predicated region
        $region81: #{tpu_custom_call.1} parent=79 // pred_check
          %p1564 = pneg %p218
        $region82: #{tpu_custom_call.1} parent=79 // pred_check_branch
          %1566 = sbr.rel (%p1564) target = $region84
        $region83: #{tpu_custom_call.1} parent=79 // pred_region
          %s1567 = sand.u32 %s203, 1
          %s1568 = scalar_lea.sflag [#allocation6], %s1567
          %s1569 = sand.u32 %s203, 1
          %s1570 = smul.addr %s1569, 32
          %s1571 = scalar_lea.vmem [#allocation12], %s1570
          %1572 = dma.done %s1568, 512
        $region84: #{tpu_custom_call.1} parent=79 // pred_fallthru
          _
      $region80: #{tpu_custom_call.1} parent=5 // pred_fallthru
        _
    $region6: #{tpu_custom_call.1} parent=1 // loop_footer
      %s25 = sadd.s32 1, %s21
    $region7: #{tpu_custom_call.1} parent=1 // loop_footer_branch
      %20 = sbr.rel target = $region3
    $region8: #{tpu_custom_call.1} parent=1 // loop_exit
      _
    %1573 = vsyncpa [#allocation5], 1
    %s1574 = scalar_lea.sflag [#allocation5], 1
    %1575 = vsyncpa %s1574, 1
    %1576 = vsyncpa [#allocation8], 1
    %1577 = vsyncpa [#allocation11], 1
    %1578 = vsyncpa [#allocation6], 1
    %s1579 = scalar_lea.sflag [#allocation6], 1
    %1580 = vsyncpa %s1579, 1

</llo_original>
